<compile_context>
chip_gen: v6e
topology: v6e:2x2x1
jax: 0.10.0
libtpu: 0.0.40
codegen_flags: <defaults>
</compile_context>

<pallas_src>
import functools

import jax
import jax.numpy as jnp
from jax import lax
from jax.experimental import pallas as pl
from jax.experimental.pallas import tpu as pltpu


MXU_DTYPE = jnp.bfloat16      # operand dtype for MXU matmuls (f32 accumulation)
LANE_PAD = 128                # pad logits output to a lane-dense slab
ATTN_PAD = 8                  # attention GCN output padded to 8 cols (col 0 real)


# ------------------------------ fused kernel ---------------------------------

def _modela_kernel(a_ref, x_ref, member_ref, membert_ref,
                   w1_ref, b1_ref, w2_ref, b2_ref, w3_ref, b3_ref,
                   wa_ref, ba_ref,
                   fc1w_ref, fc1b_ref, fc2w_ref, fc2b_ref, fc3w_ref, fc3b_ref,
                   o_ref, *, keep_ratio):
    """ModelA forward for one graph-batch; adjacency stays resident in VMEM."""
    f32 = jnp.float32
    a = a_ref[...]                        # (N,N) bf16
    n = a.shape[0]
    g_num = member_ref.shape[0]
    npg = n // g_num                      # nodes per graph (contiguous equal-size)

    def mxu(lhs, rhs):                    # bf16 operands, f32 accumulation
        return jnp.dot(lhs, rhs, preferred_element_type=f32)

    def gcn(h_bf, w_ref, b_ref):          # relu(A @ (X @ W) + b)
        support = mxu(h_bf, w_ref[...]).astype(MXU_DTYPE)
        return jnp.maximum(mxu(a, support) + b_ref[...], 0.0)

    # --- three stacked GCN layers --------------------------------------------
    g1 = gcn(x_ref[...], w1_ref, b1_ref)              # (N,H) f32
    g2 = gcn(g1.astype(MXU_DTYPE), w2_ref, b2_ref)    # (N,H) f32
    g3 = gcn(g2.astype(MXU_DTYPE), w3_ref, b3_ref)    # (N,H) f32
    feat = jnp.concatenate([g1, g2, g3], axis=1)      # (N,3H) f32
    feat_bf = feat.astype(MXU_DTYPE)

    # --- attention score GCN (wa zero-padded to ATTN_PAD cols; col 0 is real) -
    sup_a = mxu(feat_bf, wa_ref[...]).astype(MXU_DTYPE)      # (N,8) bf16
    s8 = jnp.tanh(mxu(a, sup_a) + ba_ref[...])               # (N,8) f32
    s = s8[:, 0:1]                                           # (N,1) column form
    s_row = jnp.transpose(s8)[0:1, :]                        # (1,N) exact row form

    # --- top_rank: keep top int(keep_ratio * n_g) nodes of each graph ---------
    rid = lax.broadcasted_iota(jnp.int32, (n, 1), 0)         # (N,1)
    cid = lax.broadcasted_iota(jnp.int32, (n, n), 1)         # (N,N) single big iota
    # node j "beats" node i; ties broken by lower node index (total order)
    beats = (s_row > s) | ((s_row == s) & (cid < rid))       # (N,N) bool
    beats_bf = beats.astype(f32).astype(MXU_DTYPE)           # 0/1 exact in bf16
    membert_bf = membert_ref[...]                            # (N,G) bf16 0/1
    membert_f = membert_bf.astype(f32)
    cnt = mxu(beats_bf, membert_bf)                          # (N,G) beat counts per graph
    rank = jnp.sum(membert_f * cnt, axis=1, keepdims=True)   # (N,1) same-graph rank
    gcounts = jnp.sum(membert_f, axis=0, keepdims=True)      # (1,G) graph sizes
    gsize = jnp.sum(membert_f * gcounts, axis=1, keepdims=True)   # (N,1)
    # TODO(synk): f32 floor may differ by +-1 from python int(keep_ratio*n) at
    #             representability edges (e.g. 0.3*10); exact for ModelA's 0.5.
    keep = (rank < jnp.floor(f32(keep_ratio) * gsize)).astype(f32)   # (N,1)

    # pooled node features: feat[mask] * attn[mask]   (dropped rows zeroed)
    hidden = feat * (s * keep)                               # (N,3H) f32

    # --- global mean pool over kept nodes (MXU, bf16 0/1 masks) ---------------
    member_bf = member_ref[...]                              # (G,N) bf16 0/1
    counts = mxu(member_bf, keep.astype(MXU_DTYPE))          # (G,1)
    sums = mxu(member_bf, hidden.astype(MXU_DTYPE))          # (G,3H)
    avg = sums / jnp.maximum(counts, 1.0)

    # --- global max pool: one-pass segment max (contiguous equal-size graphs) -
    hidden_neg = hidden + (keep - 1.0) * f32(1e30)           # dropped rows -> -1e30
    mx = jnp.max(hidden_neg.reshape(g_num, npg, hidden.shape[1]), axis=1)  # (G,3H)
    mx = jnp.where(counts > 0.0, mx, 0.0)                    # empty graph -> 0

    readout = jnp.concatenate([avg, mx], axis=1)             # (G,6H)

    # --- classifier MLP: Linear -> ReLU -> Linear -> ReLU -> Linear (tiny, f32)
    h = jnp.maximum(jnp.dot(readout, fc1w_ref[...],
                            preferred_element_type=f32) + fc1b_ref[...], 0.0)
    h = jnp.maximum(jnp.dot(h, fc2w_ref[...],
                            preferred_element_type=f32) + fc2b_ref[...], 0.0)
    o_ref[...] = jnp.dot(h, fc3w_ref[...],
                         preferred_element_type=f32) + fc3b_ref[...]


# -------------------------------- wrappers ------------------------------------

def _vmem_limit_bytes():
    cap = 128 * 1024 * 1024
    try:
        info = pltpu.get_tpu_info()
        cap = int(getattr(info, "vmem_capacity_bytes", cap))
    except Exception:
        pass
    # ~48 MiB on v7x (64 MiB physical), ~96 MiB on v5e/v6e (128 MiB physical)
    return max(32 * 1024 * 1024, min(96 * 1024 * 1024, (cap * 3) // 4))


def model_a_forward_batched(params, adjacency, x, graph_id, num_graphs,
                            keep_ratio=0.5):
    """adjacency: (B,N,N) normalized dense; x: (B,N,F); graph_id: (B,N) int."""
    B, N, _ = adjacency.shape
    G = num_graphs
    H = params['gcn1_w'].shape[1]
    F = x.shape[-1]
    num_classes = params['fc3_w'].shape[1]
    c_pad = max(LANE_PAD, num_classes)

    # graph membership one-hot (B,G,N) and its transpose (B,N,G), exact in bf16
    gids = jnp.arange(G, dtype=graph_id.dtype)
    member = (graph_id[:, None, :] == gids[None, :, None]).astype(MXU_DTYPE)
    membert = jnp.swapaxes(member, 1, 2)

    # attention weight padded to ATTN_PAD output cols; fc3 padded lane-dense
    wa8 = jnp.zeros((params['attn_w'].shape[0], ATTN_PAD), jnp.float32
                    ).at[:, :1].set(params['attn_w'])
    ba8 = jnp.zeros((1, ATTN_PAD), jnp.float32
                    ).at[:, :1].set(params['attn_b'][None, :])
    fc3_w = jnp.zeros((params['fc3_w'].shape[0], c_pad), jnp.float32
                      ).at[:, :num_classes].set(params['fc3_w'])
    fc3_b = jnp.zeros((1, c_pad), jnp.float32
                      ).at[:, :num_classes].set(params['fc3_b'][None, :])

    batched_args = [adjacency.astype(MXU_DTYPE), x.astype(MXU_DTYPE),
                    member, membert]
    shared_args = [
        params['gcn1_w'].astype(MXU_DTYPE), params['gcn1_b'][None, :],
        params['gcn2_w'].astype(MXU_DTYPE), params['gcn2_b'][None, :],
        params['gcn3_w'].astype(MXU_DTYPE), params['gcn3_b'][None, :],
        wa8.astype(MXU_DTYPE), ba8,
        params['fc1_w'], params['fc1_b'][None, :],
        params['fc2_w'], params['fc2_b'][None, :],
        fc3_w, fc3_b,
    ]

    def batched_spec(arr):
        nrest = arr.ndim - 1
        return pl.BlockSpec((None,) + tuple(arr.shape[1:]),
                            lambda b, n=nrest: (b,) + (0,) * n)

    def shared_spec(arr):
        return pl.BlockSpec(tuple(arr.shape), lambda b, n=arr.ndim: (0,) * n)

    in_specs = ([batched_spec(a) for a in batched_args]
                + [shared_spec(a) for a in shared_args])

    flops_b = 2 * (
        N * F * H + 2 * N * H * H                   # X@W / g@W
        + 3 * N * N * H                             # A @ support (3 GCN layers)
        + N * 3 * H * ATTN_PAD + N * N * ATTN_PAD   # attention GCN (padded)
        + N * N * G                                 # rank matmul
        + G * N * (3 * H + 1)                       # mean-pool sums + counts
        + G * (6 * H * H + H * (H // 2) + (H // 2) * c_pad))   # MLP
    bytes_batched = sum(int(a.size) * a.dtype.itemsize for a in batched_args)
    bytes_shared = sum(int(a.size) * a.dtype.itemsize for a in shared_args)
    cost = pl.CostEstimate(flops=B * flops_b,
                           transcendentals=B * N * ATTN_PAD,
                           bytes_accessed=bytes_batched + bytes_shared
                           + B * G * c_pad * 4)

    kernel = functools.partial(_modela_kernel, keep_ratio=float(keep_ratio))
    logits_pad = pl.pallas_call(
        kernel,
        out_shape=jax.ShapeDtypeStruct((B, G, c_pad), jnp.float32),
        grid=(B,),
        in_specs=in_specs,
        out_specs=pl.BlockSpec((None, G, c_pad), lambda b: (b, 0, 0)),
        compiler_params=pltpu.CompilerParams(
            dimension_semantics=("parallel",),
            vmem_limit_bytes=_vmem_limit_bytes()),
        cost_estimate=cost,
    )(*batched_args, *shared_args)
    return logits_pad[:, :, :num_classes]


def model_a_forward(params, adjacency, x, graph_id, num_graphs, keep_ratio=0.5):
    """Single graph-batch convenience wrapper (original ModelA.forward signature)."""
    out = model_a_forward_batched(params, adjacency[None], x[None],
                                  graph_id[None], num_graphs, keep_ratio)
    return out[0]


# ---------------------------- data prep helpers --------------------------------

def normalization_dense(adjacency):
    """Dense analogue of normalization(): L = D^-1/2 (A + I) D^-1/2."""
    n = adjacency.shape[0]
    a_hat = (adjacency != 0).astype(jnp.float32) + jnp.eye(n, dtype=jnp.float32)
    deg = jnp.sum(a_hat, axis=1)
    d_inv_sqrt = 1.0 / jnp.sqrt(jnp.maximum(deg, 1e-12))
    return d_inv_sqrt[:, None] * a_hat * d_inv_sqrt[None, :]


def init_params(key, input_dim, hidden_dim, num_classes):
    keys = jax.random.split(key, 10)

    def kaiming_uniform(k, shape):        # torch init.kaiming_uniform_ (fan_in = dim 1)
        bound = (6.0 / shape[1]) ** 0.5
        return jax.random.uniform(k, shape, jnp.float32, -bound, bound)

    def linear(kw, kb, fan_in, fan_out):  # torch nn.Linear default init (W stored (in,out))
        bound = 1.0 / (fan_in ** 0.5)
        w = jax.random.uniform(kw, (fan_in, fan_out), jnp.float32, -bound, bound)
        b = jax.random.uniform(kb, (fan_out,), jnp.float32, -bound, bound)
        return w, b

    p = {
        'gcn1_w': kaiming_uniform(keys[0], (input_dim, hidden_dim)),
        'gcn1_b': jnp.zeros((hidden_dim,), jnp.float32),
        'gcn2_w': kaiming_uniform(keys[1], (hidden_dim, hidden_dim)),
        'gcn2_b': jnp.zeros((hidden_dim,), jnp.float32),
        'gcn3_w': kaiming_uniform(keys[2], (hidden_dim, hidden_dim)),
        'gcn3_b': jnp.zeros((hidden_dim,), jnp.float32),
        'attn_w': kaiming_uniform(keys[3], (hidden_dim * 3, 1)),
        'attn_b': jnp.zeros((1,), jnp.float32),
    }
    p['fc1_w'], p['fc1_b'] = linear(keys[4], keys[5], hidden_dim * 3 * 2, hidden_dim)
    p['fc2_w'], p['fc2_b'] = linear(keys[6], keys[7], hidden_dim, hidden_dim // 2)
    p['fc3_w'], p['fc3_b'] = linear(keys[8], keys[9], hidden_dim // 2, num_classes)
    return p


# ----------------------------------- main --------------------------------------

if __name__ == "__main__":
    key = jax.random.PRNGKey(0)
    batch, num_graphs, nodes_per_graph = 2, 4, 16
    input_dim, hidden_dim, num_classes = 16, 32, 2
    n_nodes = num_graphs * nodes_per_graph

    k_adj, k_lbl, k_par = jax.random.split(key, 3)

    # contiguous equal-size graphs per batch (as in DD mini-batching)
    graph_id = jnp.repeat(jnp.arange(num_graphs, dtype=jnp.int32), nodes_per_graph)
    graph_id_b = jnp.broadcast_to(graph_id, (batch, n_nodes))

    # block-diagonal random symmetric 0/1 adjacency per batch (no self-loops)
    same_graph = (graph_id[:, None] == graph_id[None, :])
    upper_tri = jnp.triu(jnp.ones((n_nodes, n_nodes), dtype=bool), k=1)
    rnd = jax.random.uniform(k_adj, (batch, n_nodes, n_nodes))
    upper = (rnd < 0.35) & upper_tri[None]
    adj01 = ((upper | jnp.swapaxes(upper, 1, 2)) & same_graph[None]).astype(jnp.float32)

    # one-hot node-label features (like the DD dataset preprocessing)
    node_labels = jax.random.randint(k_lbl, (batch, n_nodes), 0, input_dim)
    x = jax.nn.one_hot(node_labels, input_dim, dtype=jnp.float32)

    # normalized adjacency L = D^-1/2 (A + I) D^-1/2, as fed to ModelA.forward
    a0 = jax.vmap(normalization_dense)(adj01)

    params = init_params(k_par, input_dim, hidden_dim, num_classes)

    fwd = jax.jit(functools.partial(model_a_forward_batched, num_graphs=num_graphs))
    logits = fwd(params, a0, x, graph_id_b)
    jax.block_until_ready(logits)
    assert logits.shape == (batch, num_graphs, num_classes)
    assert bool(jnp.all(jnp.isfinite(logits)))
    print("KERNEL_OK")
</pallas_src>

<mosaic_0001>
module attributes {stable_mosaic.version = 11 : i64} {
  func.func @_modela_kernel(%arg0: i32, %arg1: memref<1x64x64xbf16, #tpu.memory_space<vmem>>, %arg2: memref<1x64x16xbf16, #tpu.memory_space<vmem>>, %arg3: memref<1x4x64xbf16, #tpu.memory_space<vmem>>, %arg4: memref<1x64x4xbf16, #tpu.memory_space<vmem>>, %arg5: memref<16x32xbf16, #tpu.memory_space<vmem>>, %arg6: memref<1x32xf32, #tpu.memory_space<vmem>>, %arg7: memref<32x32xbf16, #tpu.memory_space<vmem>>, %arg8: memref<1x32xf32, #tpu.memory_space<vmem>>, %arg9: memref<32x32xbf16, #tpu.memory_space<vmem>>, %arg10: memref<1x32xf32, #tpu.memory_space<vmem>>, %arg11: memref<96x8xbf16, #tpu.memory_space<vmem>>, %arg12: memref<1x8xf32, #tpu.memory_space<vmem>>, %arg13: memref<192x32xf32, #tpu.memory_space<vmem>>, %arg14: memref<1x32xf32, #tpu.memory_space<vmem>>, %arg15: memref<32x16xf32, #tpu.memory_space<vmem>>, %arg16: memref<1x16xf32, #tpu.memory_space<vmem>>, %arg17: memref<16x128xf32, #tpu.memory_space<vmem>>, %arg18: memref<1x128xf32, #tpu.memory_space<vmem>>, %arg19: memref<1x4x128xf32, #tpu.memory_space<vmem>>) attributes {dimension_semantics = [#tpu.dimension_semantics<parallel>], iteration_bounds = array<i64: 2>, scalar_prefetch = 0 : i64, scratch_operands = 0 : i64, tpu.core_type = #tpu.core_type<tc>, window_params = [{transform_indices = @transform_0, window_bounds = array<i64: 1, 64, 64>}, {transform_indices = @transform_1, window_bounds = array<i64: 1, 64, 16>}, {transform_indices = @transform_2, window_bounds = array<i64: 1, 4, 64>}, {transform_indices = @transform_3, window_bounds = array<i64: 1, 64, 4>}, {pipeline_mode = #tpu.pipeline_mode<synchronous>, transform_indices = @transform_4, window_bounds = array<i64: 16, 32>}, {pipeline_mode = #tpu.pipeline_mode<synchronous>, transform_indices = @transform_5, window_bounds = array<i64: 1, 32>}, {pipeline_mode = #tpu.pipeline_mode<synchronous>, transform_indices = @transform_6, window_bounds = array<i64: 32, 32>}, {pipeline_mode = #tpu.pipeline_mode<synchronous>, transform_indices = @transform_7, window_bounds = array<i64: 1, 32>}, {pipeline_mode = #tpu.pipeline_mode<synchronous>, transform_indices = @transform_8, window_bounds = array<i64: 32, 32>}, {pipeline_mode = #tpu.pipeline_mode<synchronous>, transform_indices = @transform_9, window_bounds = array<i64: 1, 32>}, {pipeline_mode = #tpu.pipeline_mode<synchronous>, transform_indices = @transform_10, window_bounds = array<i64: 96, 8>}, {pipeline_mode = #tpu.pipeline_mode<synchronous>, transform_indices = @transform_11, window_bounds = array<i64: 1, 8>}, {pipeline_mode = #tpu.pipeline_mode<synchronous>, transform_indices = @transform_12, window_bounds = array<i64: 192, 32>}, {pipeline_mode = #tpu.pipeline_mode<synchronous>, transform_indices = @transform_13, window_bounds = array<i64: 1, 32>}, {pipeline_mode = #tpu.pipeline_mode<synchronous>, transform_indices = @transform_14, window_bounds = array<i64: 32, 16>}, {pipeline_mode = #tpu.pipeline_mode<synchronous>, transform_indices = @transform_15, window_bounds = array<i64: 1, 16>}, {pipeline_mode = #tpu.pipeline_mode<synchronous>, transform_indices = @transform_16, window_bounds = array<i64: 16, 128>}, {pipeline_mode = #tpu.pipeline_mode<synchronous>, transform_indices = @transform_17, window_bounds = array<i64: 1, 128>}, {transform_indices = @transform_18, window_bounds = array<i64: 1, 4, 128>}]} {
    %c0 = arith.constant 0 : index
    %c0_0 = arith.constant 0 : index
    %c0_1 = arith.constant 0 : index
    %0 = vector.load %arg1[%c0, %c0_0, %c0_1] : memref<1x64x64xbf16, #tpu.memory_space<vmem>>, vector<1x64x64xbf16>
    %1 = vector.shape_cast %0 : vector<1x64x64xbf16> to vector<64x64xbf16>
    %c0_2 = arith.constant 0 : index
    %c0_3 = arith.constant 0 : index
    %c0_4 = arith.constant 0 : index
    %2 = vector.load %arg2[%c0_2, %c0_3, %c0_4] : memref<1x64x16xbf16, #tpu.memory_space<vmem>>, vector<1x64x16xbf16>
    %3 = vector.shape_cast %2 : vector<1x64x16xbf16> to vector<64x16xbf16>
    %c0_5 = arith.constant 0 : index
    %c0_6 = arith.constant 0 : index
    %4 = vector.load %arg5[%c0_5, %c0_6] : memref<16x32xbf16, #tpu.memory_space<vmem>>, vector<16x32xbf16>
    %cst = arith.constant dense<0.000000e+00> : vector<64x32xf32>
    %5 = tpu.matmul %3, %4, %cst {dimension_numbers = #tpu.dot_dimension_numbers<[1], [0], [0], [1], [0, 0, 1, 1], [], []>} : vector<64x16xbf16>, vector<16x32xbf16>, vector<64x32xf32> -> vector<64x32xf32>
    %6 = arith.truncf %5 : vector<64x32xf32> to vector<64x32xbf16>
    %cst_7 = arith.constant dense<0.000000e+00> : vector<64x32xf32>
    %7 = tpu.matmul %1, %6, %cst_7 {dimension_numbers = #tpu.dot_dimension_numbers<[1], [0], [0], [1], [0, 0, 1, 1], [], []>} : vector<64x64xbf16>, vector<64x32xbf16>, vector<64x32xf32> -> vector<64x32xf32>
    %c0_8 = arith.constant 0 : index
    %c0_9 = arith.constant 0 : index
    %8 = vector.load %arg6[%c0_8, %c0_9] : memref<1x32xf32, #tpu.memory_space<vmem>>, vector<1x32xf32>
    %9 = vector.broadcast %8 : vector<1x32xf32> to vector<64x32xf32>
    %10 = arith.addf %7, %9 : vector<64x32xf32>
    %cst_10 = arith.constant 0.000000e+00 : f32
    %11 = vector.broadcast %cst_10 : f32 to vector<64x32xf32>
    %12 = arith.maximumf %10, %11 : vector<64x32xf32>
    %13 = arith.truncf %12 : vector<64x32xf32> to vector<64x32xbf16>
    %c0_11 = arith.constant 0 : index
    %c0_12 = arith.constant 0 : index
    %14 = vector.load %arg7[%c0_11, %c0_12] : memref<32x32xbf16, #tpu.memory_space<vmem>>, vector<32x32xbf16>
    %cst_13 = arith.constant dense<0.000000e+00> : vector<64x32xf32>
    %15 = tpu.matmul %13, %14, %cst_13 {dimension_numbers = #tpu.dot_dimension_numbers<[1], [0], [0], [1], [0, 0, 1, 1], [], []>} : vector<64x32xbf16>, vector<32x32xbf16>, vector<64x32xf32> -> vector<64x32xf32>
    %16 = arith.truncf %15 : vector<64x32xf32> to vector<64x32xbf16>
    %cst_14 = arith.constant dense<0.000000e+00> : vector<64x32xf32>
    %17 = tpu.matmul %1, %16, %cst_14 {dimension_numbers = #tpu.dot_dimension_numbers<[1], [0], [0], [1], [0, 0, 1, 1], [], []>} : vector<64x64xbf16>, vector<64x32xbf16>, vector<64x32xf32> -> vector<64x32xf32>
    %c0_15 = arith.constant 0 : index
    %c0_16 = arith.constant 0 : index
    %18 = vector.load %arg8[%c0_15, %c0_16] : memref<1x32xf32, #tpu.memory_space<vmem>>, vector<1x32xf32>
    %19 = vector.broadcast %18 : vector<1x32xf32> to vector<64x32xf32>
    %20 = arith.addf %17, %19 : vector<64x32xf32>
    %cst_17 = arith.constant 0.000000e+00 : f32
    %21 = vector.broadcast %cst_17 : f32 to vector<64x32xf32>
    %22 = arith.maximumf %20, %21 : vector<64x32xf32>
    %23 = arith.truncf %22 : vector<64x32xf32> to vector<64x32xbf16>
    %c0_18 = arith.constant 0 : index
    %c0_19 = arith.constant 0 : index
    %24 = vector.load %arg9[%c0_18, %c0_19] : memref<32x32xbf16, #tpu.memory_space<vmem>>, vector<32x32xbf16>
    %cst_20 = arith.constant dense<0.000000e+00> : vector<64x32xf32>
    %25 = tpu.matmul %23, %24, %cst_20 {dimension_numbers = #tpu.dot_dimension_numbers<[1], [0], [0], [1], [0, 0, 1, 1], [], []>} : vector<64x32xbf16>, vector<32x32xbf16>, vector<64x32xf32> -> vector<64x32xf32>
    %26 = arith.truncf %25 : vector<64x32xf32> to vector<64x32xbf16>
    %cst_21 = arith.constant dense<0.000000e+00> : vector<64x32xf32>
    %27 = tpu.matmul %1, %26, %cst_21 {dimension_numbers = #tpu.dot_dimension_numbers<[1], [0], [0], [1], [0, 0, 1, 1], [], []>} : vector<64x64xbf16>, vector<64x32xbf16>, vector<64x32xf32> -> vector<64x32xf32>
    %c0_22 = arith.constant 0 : index
    %c0_23 = arith.constant 0 : index
    %28 = vector.load %arg10[%c0_22, %c0_23] : memref<1x32xf32, #tpu.memory_space<vmem>>, vector<1x32xf32>
    %29 = vector.broadcast %28 : vector<1x32xf32> to vector<64x32xf32>
    %30 = arith.addf %27, %29 : vector<64x32xf32>
    %cst_24 = arith.constant 0.000000e+00 : f32
    %31 = vector.broadcast %cst_24 : f32 to vector<64x32xf32>
    %32 = arith.maximumf %30, %31 : vector<64x32xf32>
    %33 = tpu.concatenate %12, %22, %32 in 1 : vector<64x32xf32>, vector<64x32xf32>, vector<64x32xf32> -> vector<64x96xf32>
    %34 = arith.truncf %33 : vector<64x96xf32> to vector<64x96xbf16>
    %c0_25 = arith.constant 0 : index
    %c0_26 = arith.constant 0 : index
    %35 = vector.load %arg11[%c0_25, %c0_26] : memref<96x8xbf16, #tpu.memory_space<vmem>>, vector<96x8xbf16>
    %cst_27 = arith.constant dense<0.000000e+00> : vector<64x8xf32>
    %36 = tpu.matmul %34, %35, %cst_27 {dimension_numbers = #tpu.dot_dimension_numbers<[1], [0], [0], [1], [0, 0, 1, 1], [], []>} : vector<64x96xbf16>, vector<96x8xbf16>, vector<64x8xf32> -> vector<64x8xf32>
    %37 = arith.truncf %36 : vector<64x8xf32> to vector<64x8xbf16>
    %cst_28 = arith.constant dense<0.000000e+00> : vector<64x8xf32>
    %38 = tpu.matmul %1, %37, %cst_28 {dimension_numbers = #tpu.dot_dimension_numbers<[1], [0], [0], [1], [0, 0, 1, 1], [], []>} : vector<64x64xbf16>, vector<64x8xbf16>, vector<64x8xf32> -> vector<64x8xf32>
    %c0_29 = arith.constant 0 : index
    %c0_30 = arith.constant 0 : index
    %39 = vector.load %arg12[%c0_29, %c0_30] : memref<1x8xf32, #tpu.memory_space<vmem>>, vector<1x8xf32>
    %40 = vector.broadcast %39 : vector<1x8xf32> to vector<64x8xf32>
    %41 = arith.addf %38, %40 : vector<64x8xf32>
    %42 = math.tanh %41 : vector<64x8xf32>
    %43 = vector.extract_strided_slice %42 {offsets = [0, 0], sizes = [64, 1], strides = [1, 1]} : vector<64x8xf32> to vector<64x1xf32>
    %44 = tpu.transpose %42, [1, 0] : vector<64x8xf32> -> vector<8x64xf32>
    %45 = vector.extract_strided_slice %44 {offsets = [0, 0], sizes = [1, 64], strides = [1, 1]} : vector<8x64xf32> to vector<1x64xf32>
    %46 = tpu.iota {dimensions = array<i32: 0>} : vector<64x1xi32>
    %47 = tpu.iota {dimensions = array<i32: 1>} : vector<64x64xi32>
    %48 = vector.broadcast %45 : vector<1x64xf32> to vector<64x64xf32>
    %49 = vector.broadcast %43 : vector<64x1xf32> to vector<64x64xf32>
    %50 = arith.cmpf ogt, %48, %49 : vector<64x64xf32>
    %51 = vector.broadcast %45 : vector<1x64xf32> to vector<64x64xf32>
    %52 = vector.broadcast %43 : vector<64x1xf32> to vector<64x64xf32>
    %53 = arith.cmpf oeq, %51, %52 : vector<64x64xf32>
    %54 = vector.broadcast %46 : vector<64x1xi32> to vector<64x64xi32>
    %55 = arith.cmpi slt, %47, %54 : vector<64x64xi32>
    %56 = arith.andi %53, %55 : vector<64x64xi1>
    %57 = arith.ori %50, %56 : vector<64x64xi1>
    %58 = arith.extui %57 : vector<64x64xi1> to vector<64x64xi32>
    %59 = arith.sitofp %58 : vector<64x64xi32> to vector<64x64xf32>
    %60 = arith.truncf %59 : vector<64x64xf32> to vector<64x64xbf16>
    %c0_31 = arith.constant 0 : index
    %c0_32 = arith.constant 0 : index
    %c0_33 = arith.constant 0 : index
    %61 = vector.load %arg4[%c0_31, %c0_32, %c0_33] : memref<1x64x4xbf16, #tpu.memory_space<vmem>>, vector<1x64x4xbf16>
    %62 = vector.shape_cast %61 : vector<1x64x4xbf16> to vector<64x4xbf16>
    %63 = arith.extf %62 : vector<64x4xbf16> to vector<64x4xf32>
    %cst_34 = arith.constant dense<0.000000e+00> : vector<64x4xf32>
    %64 = tpu.matmul %60, %62, %cst_34 {dimension_numbers = #tpu.dot_dimension_numbers<[1], [0], [0], [1], [0, 0, 1, 1], [], []>} : vector<64x64xbf16>, vector<64x4xbf16>, vector<64x4xf32> -> vector<64x4xf32>
    %65 = arith.mulf %63, %64 : vector<64x4xf32>
    %cst_35 = arith.constant dense<0.000000e+00> : vector<64xf32>
    %66 = vector.multi_reduction <add>, %65, %cst_35 [1] : vector<64x4xf32> to vector<64xf32>
    %67 = vector.shape_cast %66 : vector<64xf32> to vector<64x1xf32>
    %cst_36 = arith.constant dense<0.000000e+00> : vector<4xf32>
    %68 = vector.multi_reduction <add>, %63, %cst_36 [0] : vector<64x4xf32> to vector<4xf32>
    %69 = vector.shape_cast %68 : vector<4xf32> to vector<1x4xf32>
    %70 = vector.broadcast %69 : vector<1x4xf32> to vector<64x4xf32>
    %71 = arith.mulf %63, %70 : vector<64x4xf32>
    %cst_37 = arith.constant dense<0.000000e+00> : vector<64xf32>
    %72 = vector.multi_reduction <add>, %71, %cst_37 [1] : vector<64x4xf32> to vector<64xf32>
    %73 = vector.shape_cast %72 : vector<64xf32> to vector<64x1xf32>
    %cst_38 = arith.constant 5.000000e-01 : f32
    %74 = vector.broadcast %cst_38 : f32 to vector<64x1xf32>
    %75 = arith.mulf %74, %73 : vector<64x1xf32>
    %76 = math.floor %75 : vector<64x1xf32>
    %77 = arith.cmpf olt, %67, %76 : vector<64x1xf32>
    %78 = arith.extui %77 : vector<64x1xi1> to vector<64x1xi32>
    %79 = arith.sitofp %78 : vector<64x1xi32> to vector<64x1xf32>
    %80 = arith.mulf %43, %79 : vector<64x1xf32>
    %81 = vector.broadcast %80 : vector<64x1xf32> to vector<64x96xf32>
    %82 = arith.mulf %33, %81 : vector<64x96xf32>
    %c0_39 = arith.constant 0 : index
    %c0_40 = arith.constant 0 : index
    %c0_41 = arith.constant 0 : index
    %83 = vector.load %arg3[%c0_39, %c0_40, %c0_41] : memref<1x4x64xbf16, #tpu.memory_space<vmem>>, vector<1x4x64xbf16>
    %84 = vector.shape_cast %83 : vector<1x4x64xbf16> to vector<4x64xbf16>
    %85 = arith.truncf %79 : vector<64x1xf32> to vector<64x1xbf16>
    %cst_42 = arith.constant dense<0.000000e+00> : vector<4x1xf32>
    %86 = tpu.matmul %84, %85, %cst_42 {dimension_numbers = #tpu.dot_dimension_numbers<[1], [0], [0], [1], [0, 0, 1, 1], [], []>} : vector<4x64xbf16>, vector<64x1xbf16>, vector<4x1xf32> -> vector<4x1xf32>
    %87 = arith.truncf %82 : vector<64x96xf32> to vector<64x96xbf16>
    %cst_43 = arith.constant dense<0.000000e+00> : vector<4x96xf32>
    %88 = tpu.matmul %84, %87, %cst_43 {dimension_numbers = #tpu.dot_dimension_numbers<[1], [0], [0], [1], [0, 0, 1, 1], [], []>} : vector<4x64xbf16>, vector<64x96xbf16>, vector<4x96xf32> -> vector<4x96xf32>
    %cst_44 = arith.constant 1.000000e+00 : f32
    %89 = vector.broadcast %cst_44 : f32 to vector<4x1xf32>
    %90 = arith.maximumf %86, %89 : vector<4x1xf32>
    %91 = vector.broadcast %90 : vector<4x1xf32> to vector<4x96xf32>
    %92 = arith.divf %88, %91 : vector<4x96xf32>
    %cst_45 = arith.constant 1.000000e+00 : f32
    %93 = vector.broadcast %cst_45 : f32 to vector<64x1xf32>
    %94 = arith.subf %79, %93 : vector<64x1xf32>
    %cst_46 = arith.constant 1.000000e+30 : f32
    %95 = vector.broadcast %cst_46 : f32 to vector<64x1xf32>
    %96 = arith.mulf %94, %95 : vector<64x1xf32>
    %97 = vector.broadcast %96 : vector<64x1xf32> to vector<64x96xf32>
    %98 = arith.addf %82, %97 : vector<64x96xf32>
    %99 = vector.shape_cast %98 : vector<64x96xf32> to vector<4x16x96xf32>
    %cst_47 = arith.constant dense<0xFF800000> : vector<4x96xf32>
    %100 = vector.multi_reduction <maximumf>, %99, %cst_47 [1] : vector<4x16x96xf32> to vector<4x96xf32>
    %cst_48 = arith.constant 0.000000e+00 : f32
    %101 = vector.broadcast %cst_48 : f32 to vector<4x1xf32>
    %102 = arith.cmpf ogt, %86, %101 : vector<4x1xf32>
    %cst_49 = arith.constant 0.000000e+00 : f32
    %103 = vector.shape_cast %102 : vector<4x1xi1> to vector<4x1xi1>
    %104 = vector.broadcast %103 : vector<4x1xi1> to vector<4x96xi1>
    %105 = vector.broadcast %cst_49 : f32 to vector<4x96xf32>
    %106 = arith.select %104, %100, %105 : vector<4x96xi1>, vector<4x96xf32>
    %107 = tpu.concatenate %92, %106 in 1 : vector<4x96xf32>, vector<4x96xf32> -> vector<4x192xf32>
    %c0_50 = arith.constant 0 : index
    %c0_51 = arith.constant 0 : index
    %108 = vector.load %arg13[%c0_50, %c0_51] : memref<192x32xf32, #tpu.memory_space<vmem>>, vector<192x32xf32>
    %cst_52 = arith.constant dense<0.000000e+00> : vector<4x32xf32>
    %109 = tpu.matmul %107, %108, %cst_52 {dimension_numbers = #tpu.dot_dimension_numbers<[1], [0], [0], [1], [0, 0, 1, 1], [], []>} : vector<4x192xf32>, vector<192x32xf32>, vector<4x32xf32> -> vector<4x32xf32>
    %c0_53 = arith.constant 0 : index
    %c0_54 = arith.constant 0 : index
    %110 = vector.load %arg14[%c0_53, %c0_54] : memref<1x32xf32, #tpu.memory_space<vmem>>, vector<1x32xf32>
    %111 = vector.broadcast %110 : vector<1x32xf32> to vector<4x32xf32>
    %112 = arith.addf %109, %111 : vector<4x32xf32>
    %cst_55 = arith.constant 0.000000e+00 : f32
    %113 = vector.broadcast %cst_55 : f32 to vector<4x32xf32>
    %114 = arith.maximumf %112, %113 : vector<4x32xf32>
    %c0_56 = arith.constant 0 : index
    %c0_57 = arith.constant 0 : index
    %115 = vector.load %arg15[%c0_56, %c0_57] : memref<32x16xf32, #tpu.memory_space<vmem>>, vector<32x16xf32>
    %cst_58 = arith.constant dense<0.000000e+00> : vector<4x16xf32>
    %116 = tpu.matmul %114, %115, %cst_58 {dimension_numbers = #tpu.dot_dimension_numbers<[1], [0], [0], [1], [0, 0, 1, 1], [], []>} : vector<4x32xf32>, vector<32x16xf32>, vector<4x16xf32> -> vector<4x16xf32>
    %c0_59 = arith.constant 0 : index
    %c0_60 = arith.constant 0 : index
    %117 = vector.load %arg16[%c0_59, %c0_60] : memref<1x16xf32, #tpu.memory_space<vmem>>, vector<1x16xf32>
    %118 = vector.broadcast %117 : vector<1x16xf32> to vector<4x16xf32>
    %119 = arith.addf %116, %118 : vector<4x16xf32>
    %cst_61 = arith.constant 0.000000e+00 : f32
    %120 = vector.broadcast %cst_61 : f32 to vector<4x16xf32>
    %121 = arith.maximumf %119, %120 : vector<4x16xf32>
    %c0_62 = arith.constant 0 : index
    %c0_63 = arith.constant 0 : index
    %122 = vector.load %arg17[%c0_62, %c0_63] : memref<16x128xf32, #tpu.memory_space<vmem>>, vector<16x128xf32>
    %cst_64 = arith.constant dense<0.000000e+00> : vector<4x128xf32>
    %123 = tpu.matmul %121, %122, %cst_64 {dimension_numbers = #tpu.dot_dimension_numbers<[1], [0], [0], [1], [0, 0, 1, 1], [], []>} : vector<4x16xf32>, vector<16x128xf32>, vector<4x128xf32> -> vector<4x128xf32>
    %c0_65 = arith.constant 0 : index
    %c0_66 = arith.constant 0 : index
    %124 = vector.load %arg18[%c0_65, %c0_66] : memref<1x128xf32, #tpu.memory_space<vmem>>, vector<1x128xf32>
    %125 = vector.broadcast %124 : vector<1x128xf32> to vector<4x128xf32>
    %126 = arith.addf %123, %125 : vector<4x128xf32>
    %c0_67 = arith.constant 0 : index
    %c0_68 = arith.constant 0 : index
    %c0_69 = arith.constant 0 : index
    %127 = vector.load %arg19[%c0_67, %c0_68, %c0_69] : memref<1x4x128xf32, #tpu.memory_space<vmem>>, vector<1x4x128xf32>
    %128 = vector.shape_cast %127 : vector<1x4x128xf32> to vector<4x128xf32>
    %129 = vector.shape_cast %126 : vector<4x128xf32> to vector<1x4x128xf32>
    tpu.vector_store %arg19[%c0_67, %c0_68, %c0_69], %129 {strides = array<i32>} : memref<1x4x128xf32, #tpu.memory_space<vmem>>, vector<1x4x128xf32>,
    return
  }
  func.func @transform_0(%arg0: i32) -> (i32, i32, i32) {
    %c0_i32 = arith.constant 0 : i32
    %c0_i32_0 = arith.constant 0 : i32
    %c0_i32_1 = arith.constant 0 : i32
    return %arg0, %c0_i32, %c0_i32_0 : i32, i32, i32
  }
  func.func @transform_1(%arg0: i32) -> (i32, i32, i32) {
    %c0_i32 = arith.constant 0 : i32
    %c0_i32_0 = arith.constant 0 : i32
    %c0_i32_1 = arith.constant 0 : i32
    return %arg0, %c0_i32, %c0_i32_0 : i32, i32, i32
  }
  func.func @transform_2(%arg0: i32) -> (i32, i32, i32) {
    %c0_i32 = arith.constant 0 : i32
    %c0_i32_0 = arith.constant 0 : i32
    %c0_i32_1 = arith.constant 0 : i32
    return %arg0, %c0_i32, %c0_i32_0 : i32, i32, i32
  }
  func.func @transform_3(%arg0: i32) -> (i32, i32, i32) {
    %c0_i32 = arith.constant 0 : i32
    %c0_i32_0 = arith.constant 0 : i32
    %c0_i32_1 = arith.constant 0 : i32
    return %arg0, %c0_i32, %c0_i32_0 : i32, i32, i32
  }
  func.func @transform_4(%arg0: i32) -> (i32, i32) {
    %c0_i32 = arith.constant 0 : i32
    %c0_i32_0 = arith.constant 0 : i32
    %c0_i32_1 = arith.constant 0 : i32
    return %c0_i32, %c0_i32_0 : i32, i32
  }
  func.func @transform_5(%arg0: i32) -> (i32, i32) {
    %c0_i32 = arith.constant 0 : i32
    %c0_i32_0 = arith.constant 0 : i32
    %c0_i32_1 = arith.constant 0 : i32
    return %c0_i32, %c0_i32_0 : i32, i32
  }
  func.func @transform_6(%arg0: i32) -> (i32, i32) {
    %c0_i32 = arith.constant 0 : i32
    %c0_i32_0 = arith.constant 0 : i32
    %c0_i32_1 = arith.constant 0 : i32
    return %c0_i32, %c0_i32_0 : i32, i32
  }
  func.func @transform_7(%arg0: i32) -> (i32, i32) {
    %c0_i32 = arith.constant 0 : i32
    %c0_i32_0 = arith.constant 0 : i32
    %c0_i32_1 = arith.constant 0 : i32
    return %c0_i32, %c0_i32_0 : i32, i32
  }
  func.func @transform_8(%arg0: i32) -> (i32, i32) {
    %c0_i32 = arith.constant 0 : i32
    %c0_i32_0 = arith.constant 0 : i32
    %c0_i32_1 = arith.constant 0 : i32
    return %c0_i32, %c0_i32_0 : i32, i32
  }
  func.func @transform_9(%arg0: i32) -> (i32, i32) {
    %c0_i32 = arith.constant 0 : i32
    %c0_i32_0 = arith.constant 0 : i32
    %c0_i32_1 = arith.constant 0 : i32
    return %c0_i32, %c0_i32_0 : i32, i32
  }
  func.func @transform_10(%arg0: i32) -> (i32, i32) {
    %c0_i32 = arith.constant 0 : i32
    %c0_i32_0 = arith.constant 0 : i32
    %c0_i32_1 = arith.constant 0 : i32
    return %c0_i32, %c0_i32_0 : i32, i32
  }
  func.func @transform_11(%arg0: i32) -> (i32, i32) {
    %c0_i32 = arith.constant 0 : i32
    %c0_i32_0 = arith.constant 0 : i32
    %c0_i32_1 = arith.constant 0 : i32
    return %c0_i32, %c0_i32_0 : i32, i32
  }
  func.func @transform_12(%arg0: i32) -> (i32, i32) {
    %c0_i32 = arith.constant 0 : i32
    %c0_i32_0 = arith.constant 0 : i32
    %c0_i32_1 = arith.constant 0 : i32
    return %c0_i32, %c0_i32_0 : i32, i32
  }
  func.func @transform_13(%arg0: i32) -> (i32, i32) {
    %c0_i32 = arith.constant 0 : i32
    %c0_i32_0 = arith.constant 0 : i32
    %c0_i32_1 = arith.constant 0 : i32
    return %c0_i32, %c0_i32_0 : i32, i32
  }
  func.func @transform_14(%arg0: i32) -> (i32, i32) {
    %c0_i32 = arith.constant 0 : i32
    %c0_i32_0 = arith.constant 0 : i32
    %c0_i32_1 = arith.constant 0 : i32
    return %c0_i32, %c0_i32_0 : i32, i32
  }
  func.func @transform_15(%arg0: i32) -> (i32, i32) {
    %c0_i32 = arith.constant 0 : i32
    %c0_i32_0 = arith.constant 0 : i32
    %c0_i32_1 = arith.constant 0 : i32
    return %c0_i32, %c0_i32_0 : i32, i32
  }
  func.func @transform_16(%arg0: i32) -> (i32, i32) {
    %c0_i32 = arith.constant 0 : i32
    %c0_i32_0 = arith.constant 0 : i32
    %c0_i32_1 = arith.constant 0 : i32
    return %c0_i32, %c0_i32_0 : i32, i32
  }
  func.func @transform_17(%arg0: i32) -> (i32, i32) {
    %c0_i32 = arith.constant 0 : i32
    %c0_i32_0 = arith.constant 0 : i32
    %c0_i32_1 = arith.constant 0 : i32
    return %c0_i32, %c0_i32_0 : i32, i32
  }
  func.func @transform_18(%arg0: i32) -> (i32, i32, i32) {
    %c0_i32 = arith.constant 0 : i32
    %c0_i32_0 = arith.constant 0 : i32
    %c0_i32_1 = arith.constant 0 : i32
    return %arg0, %c0_i32, %c0_i32_0 : i32, i32, i32
  }
}

</mosaic_0001>

<llo_original>
// kernel: model_a_forward_batched.1
$region0: #{model_a_forward_batched.1}
  #allocation0 [shape = 'u32[]', space=smem, size = 0x4, offset = 0x4, fixed_abs, tag = 'smem constant byte address 0x4 - core index']
  #allocation1 [shape = 'u32[144,128]{1,0:T(1,128)}', space=vmem, size = 0x12000, scoped, tag = 'internal scratch']
  %s0 = inlined_call_operand.vmem [shape: bf16[2,64,64], index: 0, kind: input, shape index: {}]
  %s1 = inlined_call_operand.vmem [shape: bf16[2,64,16], index: 1, kind: input, shape index: {}]
  %s2 = inlined_call_operand.vmem [shape: bf16[2,4,64], index: 2, kind: input, shape index: {}]
  %s3 = inlined_call_operand.vmem [shape: bf16[2,64,4], index: 3, kind: input, shape index: {}]
  %s4 = inlined_call_operand.vmem [shape: bf16[16,32], index: 4, kind: input, shape index: {}]
  %s5 = inlined_call_operand.vmem [shape: f32[1,32], index: 5, kind: input, shape index: {}]
  %s6 = inlined_call_operand.vmem [shape: bf16[32,32], index: 6, kind: input, shape index: {}]
  %s7 = inlined_call_operand.vmem [shape: f32[1,32], index: 7, kind: input, shape index: {}]
  %s8 = inlined_call_operand.vmem [shape: bf16[32,32], index: 8, kind: input, shape index: {}]
  %s9 = inlined_call_operand.vmem [shape: f32[1,32], index: 9, kind: input, shape index: {}]
  %s10 = inlined_call_operand.vmem [shape: bf16[96,8], index: 10, kind: input, shape index: {}]
  %s11 = inlined_call_operand.vmem [shape: f32[1,8], index: 11, kind: input, shape index: {}]
  %s12 = inlined_call_operand.vmem [shape: f32[192,32], index: 12, kind: input, shape index: {}]
  %s13 = inlined_call_operand.vmem [shape: f32[1,32], index: 13, kind: input, shape index: {}]
  %s14 = inlined_call_operand.vmem [shape: f32[32,16], index: 14, kind: input, shape index: {}]
  %s15 = inlined_call_operand.vmem [shape: f32[1,16], index: 15, kind: input, shape index: {}]
  %s16 = inlined_call_operand.vmem [shape: f32[16,128], index: 16, kind: input, shape index: {}]
  %s17 = inlined_call_operand.vmem [shape: f32[1,128], index: 17, kind: input, shape index: {}]
  %s18 = inlined_call_operand.vmem [shape: f32[2,4,128], index: 18, kind: output, shape index: {}]
  %s19 = sld [smem:[#allocation0]]
  $region105: #{model_a_forward_batched.1} parent=0
    _
  %s21 = ssub.s32 1, %s19
  %s22 = scalar_select 0, %s21, %s19
  loop: start=0, step=1, limit=4
  $region2: #{model_a_forward_batched.1} parent=0 // loop_pre_header
    _
  $region3: #{model_a_forward_batched.1} parent=0 // loop_header
    %s24 = sphi 0, %s28
    %p25 = scmp.ge.s32.totalorder %s24, 4
    %s34 = sphi 0, %s36
    %s37 = sphi 0, %s34
    %s38 = sphi 0, %s37
    %s54 = sphi 0, %s38
    %s60 = sphi 0, %s62
    %s63 = sphi 0, %s60
    %s64 = sphi 0, %s63
    %s80 = sphi 0, %s64
    %s86 = sphi 0, %s88
    %s89 = sphi 0, %s86
    %s90 = sphi 0, %s89
    %s106 = sphi 0, %s90
    %s112 = sphi 0, %s114
    %s115 = sphi 0, %s112
    %s116 = sphi 0, %s115
    %s132 = sphi 0, %s116
    %s136 = sphi 0, %s136
    %s138 = sphi 0, %s136
    %s139 = sphi 0, %s138
    %s153 = sphi 0, %s139
    %s157 = sphi 0, %s157
    %s159 = sphi 0, %s157
    %s160 = sphi 0, %s159
    %s174 = sphi 0, %s160
    %s178 = sphi 0, %s178
    %s180 = sphi 0, %s178
    %s181 = sphi 0, %s180
    %s195 = sphi 0, %s181
    %s199 = sphi 0, %s199
    %s201 = sphi 0, %s199
    %s202 = sphi 0, %s201
    %s216 = sphi 0, %s202
    %s220 = sphi 0, %s220
    %s222 = sphi 0, %s220
    %s223 = sphi 0, %s222
    %s237 = sphi 0, %s223
    %s241 = sphi 0, %s241
    %s243 = sphi 0, %s241
    %s244 = sphi 0, %s243
    %s258 = sphi 0, %s244
    %s262 = sphi 0, %s262
    %s264 = sphi 0, %s262
    %s265 = sphi 0, %s264
    %s279 = sphi 0, %s265
    %s283 = sphi 0, %s283
    %s285 = sphi 0, %s283
    %s286 = sphi 0, %s285
    %s300 = sphi 0, %s286
    %s304 = sphi 0, %s304
    %s306 = sphi 0, %s304
    %s307 = sphi 0, %s306
    %s321 = sphi 0, %s307
    %s325 = sphi 0, %s325
    %s327 = sphi 0, %s325
    %s328 = sphi 0, %s327
    %s342 = sphi 0, %s328
    %s346 = sphi 0, %s346
    %s348 = sphi 0, %s346
    %s349 = sphi 0, %s348
    %s363 = sphi 0, %s349
    %s367 = sphi 0, %s367
    %s369 = sphi 0, %s367
    %s370 = sphi 0, %s369
    %s384 = sphi 0, %s370
    %s388 = sphi 0, %s388
    %s390 = sphi 0, %s388
    %s391 = sphi 0, %s390
    %s405 = sphi 0, %s391
    %s409 = sphi 0, %s409
    %s411 = sphi 0, %s409
    %s412 = sphi 0, %s411
    %s426 = sphi 0, %s412
    %s432 = sphi 0, %s434
    %s435 = sphi 0, %s432
    %s436 = sphi 0, %s435
    %s452 = sphi 0, %s436
  $region4: #{model_a_forward_batched.1} parent=0 // loop_header_branch
    %27 = sbr.rel (%p25) target = $region8
  $region5: #{model_a_forward_batched.1} parent=0 // loop_body
    %s29 = ssub.s32 %s24, 1
    %s30 = ssub.s32 %s24, 2
    %s31 = sadd.s32 %s24, 1
    %s32 = ssub.s32 %s24, %s31
    %p33 = scmp.eq.s32.totalorder %s32, 0
    %s35 = sadd.s32 %s34, 1
    %s36 = scalar_select %p33, %s34, %s35
    %p39 = pneg %p33
    %p40 = scmp.eq.s32.totalorder %s24, 1
    %p41 = por %p39, %p40
    %p42 = scmp.ne.s32.totalorder %s34, %s37
    %p43 = scmp.eq.s32.totalorder %s24, 0
    %p44 = por %p42, %p43
    %p45 = scmp.ne.s32.totalorder %s34, %s37
    %p46 = scmp.eq.s32.totalorder %s29, 1
    %p47 = por %p45, %p46
    %p48 = scmp.ne.s32.totalorder %s37, %s38
    %p49 = scmp.eq.s32.totalorder %s29, 0
    %p50 = por %p48, %p49
    %p51 = scmp.ne.s32.totalorder %s37, %s38
    %p52 = scmp.eq.s32.totalorder %s30, 1
    %p53 = por %p51, %p52
    %p55 = scmp.ne.s32.totalorder %s38, %s54
    %p56 = scmp.eq.s32.totalorder %s30, 0
    %p57 = por %p55, %p56
    %s58 = ssub.s32 %s24, %s31
    %p59 = scmp.eq.s32.totalorder %s58, 0
    %s61 = sadd.s32 %s60, 1
    %s62 = scalar_select %p59, %s60, %s61
    %p65 = pneg %p59
    %p66 = scmp.eq.s32.totalorder %s24, 1
    %p67 = por %p65, %p66
    %p68 = scmp.ne.s32.totalorder %s60, %s63
    %p69 = scmp.eq.s32.totalorder %s24, 0
    %p70 = por %p68, %p69
    %p71 = scmp.ne.s32.totalorder %s60, %s63
    %p72 = scmp.eq.s32.totalorder %s29, 1
    %p73 = por %p71, %p72
    %p74 = scmp.ne.s32.totalorder %s63, %s64
    %p75 = scmp.eq.s32.totalorder %s29, 0
    %p76 = por %p74, %p75
    %p77 = scmp.ne.s32.totalorder %s63, %s64
    %p78 = scmp.eq.s32.totalorder %s30, 1
    %p79 = por %p77, %p78
    %p81 = scmp.ne.s32.totalorder %s64, %s80
    %p82 = scmp.eq.s32.totalorder %s30, 0
    %p83 = por %p81, %p82
    %s84 = ssub.s32 %s24, %s31
    %p85 = scmp.eq.s32.totalorder %s84, 0
    %s87 = sadd.s32 %s86, 1
    %s88 = scalar_select %p85, %s86, %s87
    %p91 = pneg %p85
    %p92 = scmp.eq.s32.totalorder %s24, 1
    %p93 = por %p91, %p92
    %p94 = scmp.ne.s32.totalorder %s86, %s89
    %p95 = scmp.eq.s32.totalorder %s24, 0
    %p96 = por %p94, %p95
    %p97 = scmp.ne.s32.totalorder %s86, %s89
    %p98 = scmp.eq.s32.totalorder %s29, 1
    %p99 = por %p97, %p98
    %p100 = scmp.ne.s32.totalorder %s89, %s90
    %p101 = scmp.eq.s32.totalorder %s29, 0
    %p102 = por %p100, %p101
    %p103 = scmp.ne.s32.totalorder %s89, %s90
    %p104 = scmp.eq.s32.totalorder %s30, 1
    %p105 = por %p103, %p104
    %p107 = scmp.ne.s32.totalorder %s90, %s106
    %p108 = scmp.eq.s32.totalorder %s30, 0
    %p109 = por %p107, %p108
    %s110 = ssub.s32 %s24, %s31
    %p111 = scmp.eq.s32.totalorder %s110, 0
    %s113 = sadd.s32 %s112, 1
    %s114 = scalar_select %p111, %s112, %s113
    %p117 = pneg %p111
    %p118 = scmp.eq.s32.totalorder %s24, 1
    %p119 = por %p117, %p118
    %p120 = scmp.ne.s32.totalorder %s112, %s115
    %p121 = scmp.eq.s32.totalorder %s24, 0
    %p122 = por %p120, %p121
    %p123 = scmp.ne.s32.totalorder %s112, %s115
    %p124 = scmp.eq.s32.totalorder %s29, 1
    %p125 = por %p123, %p124
    %p126 = scmp.ne.s32.totalorder %s115, %s116
    %p127 = scmp.eq.s32.totalorder %s29, 0
    %p128 = por %p126, %p127
    %p129 = scmp.ne.s32.totalorder %s115, %s116
    %p130 = scmp.eq.s32.totalorder %s30, 1
    %p131 = por %p129, %p130
    %p133 = scmp.ne.s32.totalorder %s116, %s132
    %p134 = scmp.eq.s32.totalorder %s30, 0
    %p135 = por %p133, %p134
    %s137 = sadd.s32 %s136, 1
    %p140 = scmp.eq.s32.totalorder %s24, 1
    %p141 = scmp.ne.s32.totalorder %s136, %s138
    %p142 = scmp.eq.s32.totalorder %s24, 0
    %p143 = por %p141, %p142
    %p144 = scmp.ne.s32.totalorder %s136, %s138
    %p145 = scmp.eq.s32.totalorder %s29, 1
    %p146 = por %p144, %p145
    %p147 = scmp.ne.s32.totalorder %s138, %s139
    %p148 = scmp.eq.s32.totalorder %s29, 0
    %p149 = por %p147, %p148
    %p150 = scmp.ne.s32.totalorder %s138, %s139
    %p151 = scmp.eq.s32.totalorder %s30, 1
    %p152 = por %p150, %p151
    %p154 = scmp.ne.s32.totalorder %s139, %s153
    %p155 = scmp.eq.s32.totalorder %s30, 0
    %p156 = por %p154, %p155
    %s158 = sadd.s32 %s157, 1
    %p161 = scmp.eq.s32.totalorder %s24, 1
    %p162 = scmp.ne.s32.totalorder %s157, %s159
    %p163 = scmp.eq.s32.totalorder %s24, 0
    %p164 = por %p162, %p163
    %p165 = scmp.ne.s32.totalorder %s157, %s159
    %p166 = scmp.eq.s32.totalorder %s29, 1
    %p167 = por %p165, %p166
    %p168 = scmp.ne.s32.totalorder %s159, %s160
    %p169 = scmp.eq.s32.totalorder %s29, 0
    %p170 = por %p168, %p169
    %p171 = scmp.ne.s32.totalorder %s159, %s160
    %p172 = scmp.eq.s32.totalorder %s30, 1
    %p173 = por %p171, %p172
    %p175 = scmp.ne.s32.totalorder %s160, %s174
    %p176 = scmp.eq.s32.totalorder %s30, 0
    %p177 = por %p175, %p176
    %s179 = sadd.s32 %s178, 1
    %p182 = scmp.eq.s32.totalorder %s24, 1
    %p183 = scmp.ne.s32.totalorder %s178, %s180
    %p184 = scmp.eq.s32.totalorder %s24, 0
    %p185 = por %p183, %p184
    %p186 = scmp.ne.s32.totalorder %s178, %s180
    %p187 = scmp.eq.s32.totalorder %s29, 1
    %p188 = por %p186, %p187
    %p189 = scmp.ne.s32.totalorder %s180, %s181
    %p190 = scmp.eq.s32.totalorder %s29, 0
    %p191 = por %p189, %p190
    %p192 = scmp.ne.s32.totalorder %s180, %s181
    %p193 = scmp.eq.s32.totalorder %s30, 1
    %p194 = por %p192, %p193
    %p196 = scmp.ne.s32.totalorder %s181, %s195
    %p197 = scmp.eq.s32.totalorder %s30, 0
    %p198 = por %p196, %p197
    %s200 = sadd.s32 %s199, 1
    %p203 = scmp.eq.s32.totalorder %s24, 1
    %p204 = scmp.ne.s32.totalorder %s199, %s201
    %p205 = scmp.eq.s32.totalorder %s24, 0
    %p206 = por %p204, %p205
    %p207 = scmp.ne.s32.totalorder %s199, %s201
    %p208 = scmp.eq.s32.totalorder %s29, 1
    %p209 = por %p207, %p208
    %p210 = scmp.ne.s32.totalorder %s201, %s202
    %p211 = scmp.eq.s32.totalorder %s29, 0
    %p212 = por %p210, %p211
    %p213 = scmp.ne.s32.totalorder %s201, %s202
    %p214 = scmp.eq.s32.totalorder %s30, 1
    %p215 = por %p213, %p214
    %p217 = scmp.ne.s32.totalorder %s202, %s216
    %p218 = scmp.eq.s32.totalorder %s30, 0
    %p219 = por %p217, %p218
    %s221 = sadd.s32 %s220, 1
    %p224 = scmp.eq.s32.totalorder %s24, 1
    %p225 = scmp.ne.s32.totalorder %s220, %s222
    %p226 = scmp.eq.s32.totalorder %s24, 0
    %p227 = por %p225, %p226
    %p228 = scmp.ne.s32.totalorder %s220, %s222
    %p229 = scmp.eq.s32.totalorder %s29, 1
    %p230 = por %p228, %p229
    %p231 = scmp.ne.s32.totalorder %s222, %s223
    %p232 = scmp.eq.s32.totalorder %s29, 0
    %p233 = por %p231, %p232
    %p234 = scmp.ne.s32.totalorder %s222, %s223
    %p235 = scmp.eq.s32.totalorder %s30, 1
    %p236 = por %p234, %p235
    %p238 = scmp.ne.s32.totalorder %s223, %s237
    %p239 = scmp.eq.s32.totalorder %s30, 0
    %p240 = por %p238, %p239
    %s242 = sadd.s32 %s241, 1
    %p245 = scmp.eq.s32.totalorder %s24, 1
    %p246 = scmp.ne.s32.totalorder %s241, %s243
    %p247 = scmp.eq.s32.totalorder %s24, 0
    %p248 = por %p246, %p247
    %p249 = scmp.ne.s32.totalorder %s241, %s243
    %p250 = scmp.eq.s32.totalorder %s29, 1
    %p251 = por %p249, %p250
    %p252 = scmp.ne.s32.totalorder %s243, %s244
    %p253 = scmp.eq.s32.totalorder %s29, 0
    %p254 = por %p252, %p253
    %p255 = scmp.ne.s32.totalorder %s243, %s244
    %p256 = scmp.eq.s32.totalorder %s30, 1
    %p257 = por %p255, %p256
    %p259 = scmp.ne.s32.totalorder %s244, %s258
    %p260 = scmp.eq.s32.totalorder %s30, 0
    %p261 = por %p259, %p260
    %s263 = sadd.s32 %s262, 1
    %p266 = scmp.eq.s32.totalorder %s24, 1
    %p267 = scmp.ne.s32.totalorder %s262, %s264
    %p268 = scmp.eq.s32.totalorder %s24, 0
    %p269 = por %p267, %p268
    %p270 = scmp.ne.s32.totalorder %s262, %s264
    %p271 = scmp.eq.s32.totalorder %s29, 1
    %p272 = por %p270, %p271
    %p273 = scmp.ne.s32.totalorder %s264, %s265
    %p274 = scmp.eq.s32.totalorder %s29, 0
    %p275 = por %p273, %p274
    %p276 = scmp.ne.s32.totalorder %s264, %s265
    %p277 = scmp.eq.s32.totalorder %s30, 1
    %p278 = por %p276, %p277
    %p280 = scmp.ne.s32.totalorder %s265, %s279
    %p281 = scmp.eq.s32.totalorder %s30, 0
    %p282 = por %p280, %p281
    %s284 = sadd.s32 %s283, 1
    %p287 = scmp.eq.s32.totalorder %s24, 1
    %p288 = scmp.ne.s32.totalorder %s283, %s285
    %p289 = scmp.eq.s32.totalorder %s24, 0
    %p290 = por %p288, %p289
    %p291 = scmp.ne.s32.totalorder %s283, %s285
    %p292 = scmp.eq.s32.totalorder %s29, 1
    %p293 = por %p291, %p292
    %p294 = scmp.ne.s32.totalorder %s285, %s286
    %p295 = scmp.eq.s32.totalorder %s29, 0
    %p296 = por %p294, %p295
    %p297 = scmp.ne.s32.totalorder %s285, %s286
    %p298 = scmp.eq.s32.totalorder %s30, 1
    %p299 = por %p297, %p298
    %p301 = scmp.ne.s32.totalorder %s286, %s300
    %p302 = scmp.eq.s32.totalorder %s30, 0
    %p303 = por %p301, %p302
    %s305 = sadd.s32 %s304, 1
    %p308 = scmp.eq.s32.totalorder %s24, 1
    %p309 = scmp.ne.s32.totalorder %s304, %s306
    %p310 = scmp.eq.s32.totalorder %s24, 0
    %p311 = por %p309, %p310
    %p312 = scmp.ne.s32.totalorder %s304, %s306
    %p313 = scmp.eq.s32.totalorder %s29, 1
    %p314 = por %p312, %p313
    %p315 = scmp.ne.s32.totalorder %s306, %s307
    %p316 = scmp.eq.s32.totalorder %s29, 0
    %p317 = por %p315, %p316
    %p318 = scmp.ne.s32.totalorder %s306, %s307
    %p319 = scmp.eq.s32.totalorder %s30, 1
    %p320 = por %p318, %p319
    %p322 = scmp.ne.s32.totalorder %s307, %s321
    %p323 = scmp.eq.s32.totalorder %s30, 0
    %p324 = por %p322, %p323
    %s326 = sadd.s32 %s325, 1
    %p329 = scmp.eq.s32.totalorder %s24, 1
    %p330 = scmp.ne.s32.totalorder %s325, %s327
    %p331 = scmp.eq.s32.totalorder %s24, 0
    %p332 = por %p330, %p331
    %p333 = scmp.ne.s32.totalorder %s325, %s327
    %p334 = scmp.eq.s32.totalorder %s29, 1
    %p335 = por %p333, %p334
    %p336 = scmp.ne.s32.totalorder %s327, %s328
    %p337 = scmp.eq.s32.totalorder %s29, 0
    %p338 = por %p336, %p337
    %p339 = scmp.ne.s32.totalorder %s327, %s328
    %p340 = scmp.eq.s32.totalorder %s30, 1
    %p341 = por %p339, %p340
    %p343 = scmp.ne.s32.totalorder %s328, %s342
    %p344 = scmp.eq.s32.totalorder %s30, 0
    %p345 = por %p343, %p344
    %s347 = sadd.s32 %s346, 1
    %p350 = scmp.eq.s32.totalorder %s24, 1
    %p351 = scmp.ne.s32.totalorder %s346, %s348
    %p352 = scmp.eq.s32.totalorder %s24, 0
    %p353 = por %p351, %p352
    %p354 = scmp.ne.s32.totalorder %s346, %s348
    %p355 = scmp.eq.s32.totalorder %s29, 1
    %p356 = por %p354, %p355
    %p357 = scmp.ne.s32.totalorder %s348, %s349
    %p358 = scmp.eq.s32.totalorder %s29, 0
    %p359 = por %p357, %p358
    %p360 = scmp.ne.s32.totalorder %s348, %s349
    %p361 = scmp.eq.s32.totalorder %s30, 1
    %p362 = por %p360, %p361
    %p364 = scmp.ne.s32.totalorder %s349, %s363
    %p365 = scmp.eq.s32.totalorder %s30, 0
    %p366 = por %p364, %p365
    %s368 = sadd.s32 %s367, 1
    %p371 = scmp.eq.s32.totalorder %s24, 1
    %p372 = scmp.ne.s32.totalorder %s367, %s369
    %p373 = scmp.eq.s32.totalorder %s24, 0
    %p374 = por %p372, %p373
    %p375 = scmp.ne.s32.totalorder %s367, %s369
    %p376 = scmp.eq.s32.totalorder %s29, 1
    %p377 = por %p375, %p376
    %p378 = scmp.ne.s32.totalorder %s369, %s370
    %p379 = scmp.eq.s32.totalorder %s29, 0
    %p380 = por %p378, %p379
    %p381 = scmp.ne.s32.totalorder %s369, %s370
    %p382 = scmp.eq.s32.totalorder %s30, 1
    %p383 = por %p381, %p382
    %p385 = scmp.ne.s32.totalorder %s370, %s384
    %p386 = scmp.eq.s32.totalorder %s30, 0
    %p387 = por %p385, %p386
    %s389 = sadd.s32 %s388, 1
    %p392 = scmp.eq.s32.totalorder %s24, 1
    %p393 = scmp.ne.s32.totalorder %s388, %s390
    %p394 = scmp.eq.s32.totalorder %s24, 0
    %p395 = por %p393, %p394
    %p396 = scmp.ne.s32.totalorder %s388, %s390
    %p397 = scmp.eq.s32.totalorder %s29, 1
    %p398 = por %p396, %p397
    %p399 = scmp.ne.s32.totalorder %s390, %s391
    %p400 = scmp.eq.s32.totalorder %s29, 0
    %p401 = por %p399, %p400
    %p402 = scmp.ne.s32.totalorder %s390, %s391
    %p403 = scmp.eq.s32.totalorder %s30, 1
    %p404 = por %p402, %p403
    %p406 = scmp.ne.s32.totalorder %s391, %s405
    %p407 = scmp.eq.s32.totalorder %s30, 0
    %p408 = por %p406, %p407
    %s410 = sadd.s32 %s409, 1
    %p413 = scmp.eq.s32.totalorder %s24, 1
    %p414 = scmp.ne.s32.totalorder %s409, %s411
    %p415 = scmp.eq.s32.totalorder %s24, 0
    %p416 = por %p414, %p415
    %p417 = scmp.ne.s32.totalorder %s409, %s411
    %p418 = scmp.eq.s32.totalorder %s29, 1
    %p419 = por %p417, %p418
    %p420 = scmp.ne.s32.totalorder %s411, %s412
    %p421 = scmp.eq.s32.totalorder %s29, 0
    %p422 = por %p420, %p421
    %p423 = scmp.ne.s32.totalorder %s411, %s412
    %p424 = scmp.eq.s32.totalorder %s30, 1
    %p425 = por %p423, %p424
    %p427 = scmp.ne.s32.totalorder %s412, %s426
    %p428 = scmp.eq.s32.totalorder %s30, 0
    %p429 = por %p427, %p428
    %s430 = ssub.s32 %s24, %s31
    %p431 = scmp.eq.s32.totalorder %s430, 0
    %s433 = sadd.s32 %s432, 1
    %s434 = scalar_select %p431, %s432, %s433
    %p437 = pneg %p431
    %p438 = scmp.eq.s32.totalorder %s24, 1
    %p439 = por %p437, %p438
    %p440 = scmp.ne.s32.totalorder %s432, %s435
    %p441 = scmp.eq.s32.totalorder %s24, 0
    %p442 = por %p440, %p441
    %p443 = scmp.ne.s32.totalorder %s432, %s435
    %p444 = scmp.eq.s32.totalorder %s29, 1
    %p445 = por %p443, %p444
    %p446 = scmp.ne.s32.totalorder %s435, %s436
    %p447 = scmp.eq.s32.totalorder %s29, 0
    %p448 = por %p446, %p447
    %p449 = scmp.ne.s32.totalorder %s435, %s436
    %p450 = scmp.eq.s32.totalorder %s30, 1
    %p451 = por %p449, %p450
    %p453 = scmp.ne.s32.totalorder %s436, %s452
    %p454 = scmp.eq.s32.totalorder %s30, 0
    %p455 = por %p453, %p454
    %p456 = scmp.le.s32.totalorder 1, %s24
    %p457 = scmp.lt.s32.totalorder %s24, 3
    %p458 = pnand %p456, %p457
    %p459 = pneg %p458
    // Predicated region
    $region9: #{model_a_forward_batched.1} parent=5 // pred_check
      _
    $region10: #{model_a_forward_batched.1} parent=5 // pred_check_branch
      %461 = sbr.rel (%p458) target = $region12
    $region11: #{model_a_forward_batched.1} parent=5 // pred_region
      %s462 = ssub.s32 %s24, 1
      // Predicated region
      $region13: #{model_a_forward_batched.1} parent=11 // pred_check
        %p463 = pneg %p149
      $region14: #{model_a_forward_batched.1} parent=11 // pred_check_branch
        %465 = sbr.rel (%p463) target = $region16
      $region15: #{model_a_forward_batched.1} parent=11 // pred_region
        _
      $region16: #{model_a_forward_batched.1} parent=11 // pred_fallthru
        _
      // Predicated region
      $region17: #{model_a_forward_batched.1} parent=11 // pred_check
        %p466 = pneg %p170
      $region18: #{model_a_forward_batched.1} parent=11 // pred_check_branch
        %468 = sbr.rel (%p466) target = $region20
      $region19: #{model_a_forward_batched.1} parent=11 // pred_region
        _
      $region20: #{model_a_forward_batched.1} parent=11 // pred_fallthru
        _
      // Predicated region
      $region21: #{model_a_forward_batched.1} parent=11 // pred_check
        %p469 = pneg %p191
      $region22: #{model_a_forward_batched.1} parent=11 // pred_check_branch
        %471 = sbr.rel (%p469) target = $region24
      $region23: #{model_a_forward_batched.1} parent=11 // pred_region
        _
      $region24: #{model_a_forward_batched.1} parent=11 // pred_fallthru
        _
      // Predicated region
      $region25: #{model_a_forward_batched.1} parent=11 // pred_check
        %p472 = pneg %p212
      $region26: #{model_a_forward_batched.1} parent=11 // pred_check_branch
        %474 = sbr.rel (%p472) target = $region28
      $region27: #{model_a_forward_batched.1} parent=11 // pred_region
        _
      $region28: #{model_a_forward_batched.1} parent=11 // pred_fallthru
        _
      // Predicated region
      $region29: #{model_a_forward_batched.1} parent=11 // pred_check
        %p475 = pneg %p233
      $region30: #{model_a_forward_batched.1} parent=11 // pred_check_branch
        %477 = sbr.rel (%p475) target = $region32
      $region31: #{model_a_forward_batched.1} parent=11 // pred_region
        _
      $region32: #{model_a_forward_batched.1} parent=11 // pred_fallthru
        _
      // Predicated region
      $region33: #{model_a_forward_batched.1} parent=11 // pred_check
        %p478 = pneg %p254
      $region34: #{model_a_forward_batched.1} parent=11 // pred_check_branch
        %480 = sbr.rel (%p478) target = $region36
      $region35: #{model_a_forward_batched.1} parent=11 // pred_region
        _
      $region36: #{model_a_forward_batched.1} parent=11 // pred_fallthru
        _
      // Predicated region
      $region37: #{model_a_forward_batched.1} parent=11 // pred_check
        %p481 = pneg %p275
      $region38: #{model_a_forward_batched.1} parent=11 // pred_check_branch
        %483 = sbr.rel (%p481) target = $region40
      $region39: #{model_a_forward_batched.1} parent=11 // pred_region
        _
      $region40: #{model_a_forward_batched.1} parent=11 // pred_fallthru
        _
      // Predicated region
      $region41: #{model_a_forward_batched.1} parent=11 // pred_check
        %p484 = pneg %p296
      $region42: #{model_a_forward_batched.1} parent=11 // pred_check_branch
        %486 = sbr.rel (%p484) target = $region44
      $region43: #{model_a_forward_batched.1} parent=11 // pred_region
        _
      $region44: #{model_a_forward_batched.1} parent=11 // pred_fallthru
        _
      // Predicated region
      $region45: #{model_a_forward_batched.1} parent=11 // pred_check
        %p487 = pneg %p317
      $region46: #{model_a_forward_batched.1} parent=11 // pred_check_branch
        %489 = sbr.rel (%p487) target = $region48
      $region47: #{model_a_forward_batched.1} parent=11 // pred_region
        _
      $region48: #{model_a_forward_batched.1} parent=11 // pred_fallthru
        _
      // Predicated region
      $region49: #{model_a_forward_batched.1} parent=11 // pred_check
        %p490 = pneg %p338
      $region50: #{model_a_forward_batched.1} parent=11 // pred_check_branch
        %492 = sbr.rel (%p490) target = $region52
      $region51: #{model_a_forward_batched.1} parent=11 // pred_region
        _
      $region52: #{model_a_forward_batched.1} parent=11 // pred_fallthru
        _
      // Predicated region
      $region53: #{model_a_forward_batched.1} parent=11 // pred_check
        %p493 = pneg %p359
      $region54: #{model_a_forward_batched.1} parent=11 // pred_check_branch
        %495 = sbr.rel (%p493) target = $region56
      $region55: #{model_a_forward_batched.1} parent=11 // pred_region
        _
      $region56: #{model_a_forward_batched.1} parent=11 // pred_fallthru
        _
      // Predicated region
      $region57: #{model_a_forward_batched.1} parent=11 // pred_check
        %p496 = pneg %p380
      $region58: #{model_a_forward_batched.1} parent=11 // pred_check_branch
        %498 = sbr.rel (%p496) target = $region60
      $region59: #{model_a_forward_batched.1} parent=11 // pred_region
        _
      $region60: #{model_a_forward_batched.1} parent=11 // pred_fallthru
        _
      // Predicated region
      $region61: #{model_a_forward_batched.1} parent=11 // pred_check
        %p499 = pneg %p401
      $region62: #{model_a_forward_batched.1} parent=11 // pred_check_branch
        %501 = sbr.rel (%p499) target = $region64
      $region63: #{model_a_forward_batched.1} parent=11 // pred_region
        _
      $region64: #{model_a_forward_batched.1} parent=11 // pred_fallthru
        _
      // Predicated region
      $region65: #{model_a_forward_batched.1} parent=11 // pred_check
        %p502 = pneg %p422
      $region66: #{model_a_forward_batched.1} parent=11 // pred_check_branch
        %504 = sbr.rel (%p502) target = $region68
      $region67: #{model_a_forward_batched.1} parent=11 // pred_region
        _
      $region68: #{model_a_forward_batched.1} parent=11 // pred_fallthru
        _
    $region12: #{model_a_forward_batched.1} parent=5 // pred_fallthru
      _
    %p505 = scmp.lt.s32.totalorder %s24, 2
    // Predicated region
    $region69: #{model_a_forward_batched.1} parent=5 // pred_check
      %p506 = pneg %p505
    $region70: #{model_a_forward_batched.1} parent=5 // pred_check_branch
      %508 = sbr.rel (%p506) target = $region72
    $region71: #{model_a_forward_batched.1} parent=5 // pred_region
      // Predicated region
      $region73: #{model_a_forward_batched.1} parent=71 // pred_check
        %p509 = pneg %p44
      $region74: #{model_a_forward_batched.1} parent=71 // pred_check_branch
        %511 = sbr.rel (%p509) target = $region76
      $region75: #{model_a_forward_batched.1} parent=71 // pred_region
        %p512 = scmp.lt.s32.totalorder %s24, 1
        %s513 = scalar_select %p512, %s24, 1
        %s514 = smul.addr %s513, 8
        %s515 = smul.addr %s514, 4
        %s516 = scalar_lea.vmem %s0, %s515
      $region76: #{model_a_forward_batched.1} parent=71 // pred_fallthru
        _
      // Predicated region
      $region77: #{model_a_forward_batched.1} parent=71 // pred_check
        %p517 = pneg %p70
      $region78: #{model_a_forward_batched.1} parent=71 // pred_check_branch
        %519 = sbr.rel (%p517) target = $region80
      $region79: #{model_a_forward_batched.1} parent=71 // pred_region
        %p520 = scmp.lt.s32.totalorder %s24, 1
        %s521 = scalar_select %p520, %s24, 1
        %s522 = smul.addr %s521, 8
        %s523 = smul.addr %s522, 4
        %s524 = scalar_lea.vmem %s1, %s523
      $region80: #{model_a_forward_batched.1} parent=71 // pred_fallthru
        _
      // Predicated region
      $region81: #{model_a_forward_batched.1} parent=71 // pred_check
        %p525 = pneg %p96
      $region82: #{model_a_forward_batched.1} parent=71 // pred_check_branch
        %527 = sbr.rel (%p525) target = $region84
      $region83: #{model_a_forward_batched.1} parent=71 // pred_region
        %p528 = scmp.lt.s32.totalorder %s24, 1
        %s529 = scalar_select %p528, %s24, 1
        %s530 = smul.addr %s529, 2
        %s531 = scalar_lea.vmem %s2, %s530
      $region84: #{model_a_forward_batched.1} parent=71 // pred_fallthru
        _
      // Predicated region
      $region85: #{model_a_forward_batched.1} parent=71 // pred_check
        %p532 = pneg %p122
      $region86: #{model_a_forward_batched.1} parent=71 // pred_check_branch
        %534 = sbr.rel (%p532) target = $region88
      $region87: #{model_a_forward_batched.1} parent=71 // pred_region
        %p535 = scmp.lt.s32.totalorder %s24, 1
        %s536 = scalar_select %p535, %s24, 1
        %s537 = smul.addr %s536, 8
        %s538 = smul.addr %s537, 4
        %s539 = scalar_lea.vmem %s3, %s538
      $region88: #{model_a_forward_batched.1} parent=71 // pred_fallthru
        _
    $region72: #{model_a_forward_batched.1} parent=5 // pred_fallthru
      _
    %p540 = scmp.le.s32.totalorder 1, %s24
    %p541 = scmp.lt.s32.totalorder %s24, 3
    %p542 = pnand %p540, %p541
    %p543 = pneg %p542
    // Predicated region
    $region89: #{model_a_forward_batched.1} parent=5 // pred_check
      _
    $region90: #{model_a_forward_batched.1} parent=5 // pred_check_branch
      %545 = sbr.rel (%p542) target = $region92
    $region91: #{model_a_forward_batched.1} parent=5 // pred_region
      %s546 = ssub.s32 %s24, 1
      %p547 = scmp.lt.s32.totalorder %s29, 1
      %s548 = scalar_select %p547, %s29, 1
      %s549 = smul.addr %s548, 8
      %s550 = smul.addr %s549, 4
      %s551 = scalar_lea.vmem %s0, %s550
      %p552 = pneg %p50
      %p553 = pneg %p47
      %p554 = scmp.lt.s32.totalorder %s29, 1
      %s555 = scalar_select %p554, %s29, 1
      %s556 = smul.addr %s555, 8
      %s557 = smul.addr %s556, 4
      %s558 = scalar_lea.vmem %s1, %s557
      %p559 = pneg %p76
      %p560 = pneg %p73
      %p561 = scmp.lt.s32.totalorder %s29, 1
      %s562 = scalar_select %p561, %s29, 1
      %s563 = smul.addr %s562, 2
      %s564 = scalar_lea.vmem %s2, %s563
      %p565 = pneg %p102
      %p566 = pneg %p99
      %p567 = scmp.lt.s32.totalorder %s29, 1
      %s568 = scalar_select %p567, %s29, 1
      %s569 = smul.addr %s568, 8
      %s570 = smul.addr %s569, 4
      %s571 = scalar_lea.vmem %s3, %s570
      %p572 = pneg %p128
      %p573 = pneg %p125
      %p574 = pneg %p149
      %p575 = pneg %p146
      %p576 = pneg %p170
      %p577 = pneg %p167
      %p578 = pneg %p191
      %p579 = pneg %p188
      %p580 = pneg %p212
      %p581 = pneg %p209
      %p582 = pneg %p233
      %p583 = pneg %p230
      %p584 = pneg %p254
      %p585 = pneg %p251
      %p586 = pneg %p275
      %p587 = pneg %p272
      %p588 = pneg %p296
      %p589 = pneg %p293
      %p590 = pneg %p317
      %p591 = pneg %p314
      %p592 = pneg %p338
      %p593 = pneg %p335
      %p594 = pneg %p359
      %p595 = pneg %p356
      %p596 = pneg %p380
      %p597 = pneg %p377
      %p598 = pneg %p401
      %p599 = pneg %p398
      %p600 = pneg %p422
      %p601 = pneg %p419
      %p602 = pneg %p448
      %p603 = pneg %p445
      %p604 = scmp.lt.s32.totalorder %s29, 1
      %s605 = scalar_select %p604, %s29, 1
      %s606 = smul.addr %s605, 4
      %s607 = scalar_lea.vmem %s18, %s606
      %p608 = scmp.lt.s32.totalorder %s29, 1
      %s609 = scalar_select %p608, %s29, 1
      %s610 = smul.addr %s609, 8
      %s611 = smul.addr %s610, 4
      %s612 = scalar_lea.vmem %s0, %s611
      %p613 = scmp.lt.s32.totalorder %s29, 1
      %s614 = scalar_select %p613, %s29, 1
      %s615 = smul.addr %s614, 8
      %s616 = smul.addr %s615, 4
      %s617 = scalar_lea.vmem %s1, %s616
      %p618 = scmp.lt.s32.totalorder %s29, 1
      %s619 = scalar_select %p618, %s29, 1
      %s620 = smul.addr %s619, 2
      %s621 = scalar_lea.vmem %s2, %s620
      %p622 = scmp.lt.s32.totalorder %s29, 1
      %s623 = scalar_select %p622, %s29, 1
      %s624 = smul.addr %s623, 8
      %s625 = smul.addr %s624, 4
      %s626 = scalar_lea.vmem %s3, %s625
      %p627 = scmp.lt.s32.totalorder %s29, 1
      %s628 = scalar_select %p627, %s29, 1
      %s629 = smul.addr %s628, 4
      %s630 = scalar_lea.vmem %s18, %s629
      %v632 = vld [vmem:[%s612] sm:$0xf]
      %v633 = vld [vmem:[%s612 + $0x4] sm:$0xf]
      %v634 = vld [vmem:[%s612 + $0x8] sm:$0xf]
      %v635 = vld [vmem:[%s612 + $0xc] sm:$0xf]
      %v636 = vld [vmem:[%s612 + $0x10] sm:$0xf]
      %v637 = vld [vmem:[%s612 + $0x14] sm:$0xf]
      %v638 = vld [vmem:[%s612 + $0x18] sm:$0xf]
      %v639 = vld [vmem:[%s612 + $0x1c] sm:$0xf]
      %v640 = vld [vmem:[%s617] sm:$0xf]
      %v641 = vld [vmem:[%s617 + $0x4] sm:$0xf]
      %v642 = vld [vmem:[%s617 + $0x8] sm:$0xf]
      %v643 = vld [vmem:[%s617 + $0xc] sm:$0xf]
      %v644 = vld [vmem:[%s617 + $0x10] sm:$0xf]
      %v645 = vld [vmem:[%s617 + $0x14] sm:$0xf]
      %v646 = vld [vmem:[%s617 + $0x18] sm:$0xf]
      %v647 = vld [vmem:[%s617 + $0x1c] sm:$0xf]
      %v648 = vld [vmem:[%s4] sm:$0xf]
      %v649 = vld [vmem:[%s4 + $0x4] sm:$0xf]
      %v658 = vunpack.c.l.b16 %v640
      %v659 = vunpack.c.l.b16 %v641
      %v660 = vunpack.c.l.b16 %v642
      %v661 = vunpack.c.l.b16 %v643
      %v662 = vunpack.c.l.b16 %v644
      %v663 = vunpack.c.l.b16 %v645
      %v664 = vunpack.c.l.b16 %v646
      %v665 = vunpack.c.l.b16 %v647
      %v666 = vpack.c.b16 %v659, %v658
      %v667 = vpack.c.b16 %v661, %v660
      %v668 = vpack.c.b16 %v663, %v662
      %v669 = vpack.c.b16 %v665, %v664
      %v672 = vunpack.c.l.b16 %v648
      %v673 = vunpack.c.l.b16 %v649
      %v674 = vpack.c.b16 %v673, %v672
      %vm676 = vcmask 130048
      %v678 = vsel %vm676, %v666, 0
      %v681 = vsel %vm676, %v667, 0
      %v684 = vsel %vm676, %v668, 0
      %v687 = vsel %vm676, %v669, 0
      %689 = vmatprep.subr.bf16.mxu0 0
      %690 = vmatpush1.bf16.msra.mxu0 0
      %691 = vmatprep.subr.bf16.mxu0 0
      %692 = vmatpush1.bf16.msra.mxu0 0
      %693 = vmatprep.subr.bf16.mxu0 0
      %694 = vmatpush1.bf16.msra.mxu0 0
      %695 = vmatprep.subr.bf16.mxu0 0
      %696 = vmatpush1.bf16.msra.mxu0 0
      %697 = vmatprep.subr.bf16.mxu0 0
      %698 = vmatpush1.bf16.msra.mxu0 0
      %699 = vmatprep.subr.bf16.mxu0 0
      %700 = vmatpush1.bf16.msra.mxu0 0
      %701 = vmatprep.subr.bf16.mxu0 0
      %702 = vmatpush1.bf16.msra.mxu0 0
      %703 = vmatprep.subr.bf16.mxu0 0
      %704 = vmatpush1.bf16.msra.mxu0 %v674
      %705 = vmatprep.subr.bf16.mxu0 0
      %706 = vmatpush2.bf16.msra.mxu0 0
      %707 = vmatprep.subr.bf16.mxu0 0
      %708 = vmatpush2.bf16.msra.mxu0 0
      %709 = vmatprep.subr.bf16.mxu0 0
      %710 = vmatpush2.bf16.msra.mxu0 0
      %711 = vmatprep.subr.bf16.mxu0 0
      %712 = vmatpush2.bf16.msra.mxu0 0
      %713 = vmatprep.subr.bf16.mxu0 0
      %714 = vmatpush2.bf16.msra.mxu0 0
      %715 = vmatprep.subr.bf16.mxu0 0
      %716 = vmatpush2.bf16.msra.mxu0 0
      %717 = vmatprep.subr.bf16.mxu0 0
      %718 = vmatpush2.bf16.msra.mxu0 0
      %719 = vmatprep.subr.bf16.mxu0 0
      %720 = vmatpush2.bf16.msra.mxu0 0
      %721 = vmatprep.mubr.bf16.mxu0 0
      %722 = vmatmul.mubr.bf16.gmra.mxu0 %v678
      %v723 = vpop.f32.mrf.mxu0
      %v724 = vadd.f32 0.0, %v723
      %v725 = vpop.f32.mrf.mxu0
      %v726 = vpop.f32.mrf.mxu0
      %v727 = vadd.f32 0.0, %v726
      %v728 = vpop.f32.mrf.mxu0
      %729 = vmatprep.mubr.bf16.mxu0 0
      %730 = vmatmul.mubr.bf16.gmra.mxu0 %v681
      %v731 = vpop.f32.mrf.mxu0
      %v732 = vadd.f32 0.0, %v731
      %v733 = vpop.f32.mrf.mxu0
      %v734 = vpop.f32.mrf.mxu0
      %v735 = vadd.f32 0.0, %v734
      %v736 = vpop.f32.mrf.mxu0
      %737 = vmatprep.mubr.bf16.mxu0 0
      %738 = vmatmul.mubr.bf16.gmra.mxu0 %v684
      %v739 = vpop.f32.mrf.mxu0
      %v740 = vadd.f32 0.0, %v739
      %v741 = vpop.f32.mrf.mxu0
      %v742 = vpop.f32.mrf.mxu0
      %v743 = vadd.f32 0.0, %v742
      %v744 = vpop.f32.mrf.mxu0
      %745 = vmatprep.mubr.bf16.mxu0 0
      %746 = vmatmul.mubr.bf16.gmra.mxu0 %v687
      %v747 = vpop.f32.mrf.mxu0
      %v748 = vadd.f32 0.0, %v747
      %v749 = vpop.f32.mrf.mxu0
      %v750 = vpop.f32.mrf.mxu0
      %v751 = vadd.f32 0.0, %v750
      %v752 = vpop.f32.mrf.mxu0
      %753 = vdwg.mxu0
      %v754 = vpack.c.bf16 %v727, %v724
      %v755 = vpack.c.bf16 %v735, %v732
      %v756 = vpack.c.bf16 %v743, %v740
      %v757 = vpack.c.bf16 %v751, %v748
      %v758 = vld [vmem:[%s5] sm:$0x1]
      %v760 = vlaneseq
      %v761 = vshrl.u32 %v760, 7
      %v762 = vsub.s32 0, %v761
      %v763 = vrot.slane %v758, %v762
      %v773 = vunpack.c.l.b16 %v632
      %v774 = vunpack.c.l.b16 %v633
      %v775 = vunpack.c.l.b16 %v634
      %v776 = vunpack.c.l.b16 %v635
      %v777 = vunpack.c.l.b16 %v636
      %v778 = vunpack.c.l.b16 %v637
      %v779 = vunpack.c.l.b16 %v638
      %v780 = vunpack.c.l.b16 %v639
      %v781 = vpack.c.b16 %v774, %v773
      %v782 = vpack.c.b16 %v776, %v775
      %v783 = vpack.c.b16 %v778, %v777
      %v784 = vpack.c.b16 %v780, %v779
      %vm785 = vcmask 523264
      %v787 = vsel %vm785, %v781, 0
      %v790 = vsel %vm785, %v782, 0
      %v793 = vsel %vm785, %v783, 0
      %v796 = vsel %vm785, %v784, 0
      %798 = vmatprep.subr.bf16.mxu0 0
      %799 = vmatpush1.bf16.msra.mxu0 0
      %800 = vmatprep.subr.bf16.mxu0 0
      %801 = vmatpush1.bf16.msra.mxu0 0
      %802 = vmatprep.subr.bf16.mxu0 0
      %803 = vmatpush1.bf16.msra.mxu0 0
      %804 = vmatprep.subr.bf16.mxu0 0
      %805 = vmatpush1.bf16.msra.mxu0 0
      %806 = vmatprep.subr.bf16.mxu0 0
      %807 = vmatpush1.bf16.msra.mxu0 %v757
      %808 = vmatprep.subr.bf16.mxu0 0
      %809 = vmatpush1.bf16.msra.mxu0 %v756
      %810 = vmatprep.subr.bf16.mxu0 0
      %811 = vmatpush1.bf16.msra.mxu0 %v755
      %812 = vmatprep.subr.bf16.mxu0 0
      %813 = vmatpush1.bf16.msra.mxu0 %v754
      %814 = vmatprep.subr.bf16.mxu0 0
      %815 = vmatpush2.bf16.msra.mxu0 0
      %816 = vmatprep.subr.bf16.mxu0 0
      %817 = vmatpush2.bf16.msra.mxu0 0
      %818 = vmatprep.subr.bf16.mxu0 0
      %819 = vmatpush2.bf16.msra.mxu0 0
      %820 = vmatprep.subr.bf16.mxu0 0
      %821 = vmatpush2.bf16.msra.mxu0 0
      %822 = vmatprep.subr.bf16.mxu0 0
      %823 = vmatpush2.bf16.msra.mxu0 0
      %824 = vmatprep.subr.bf16.mxu0 0
      %825 = vmatpush2.bf16.msra.mxu0 0
      %826 = vmatprep.subr.bf16.mxu0 0
      %827 = vmatpush2.bf16.msra.mxu0 0
      %828 = vmatprep.subr.bf16.mxu0 0
      %829 = vmatpush2.bf16.msra.mxu0 0
      %830 = vmatprep.mubr.bf16.mxu0 0
      %831 = vmatmul.mubr.bf16.gmra.mxu0 %v787
      %v832 = vpop.f32.mrf.mxu0
      %v833 = vadd.f32 %v763, %v832
      %v834 = vpop.f32.mrf.mxu0
      %v835 = vpop.f32.mrf.mxu0
      %v836 = vadd.f32 %v763, %v835
      %v837 = vpop.f32.mrf.mxu0
      %838 = vmatprep.mubr.bf16.mxu0 0
      %839 = vmatmul.mubr.bf16.gmra.mxu0 %v790
      %v840 = vpop.f32.mrf.mxu0
      %v841 = vadd.f32 %v763, %v840
      %v842 = vpop.f32.mrf.mxu0
      %v843 = vpop.f32.mrf.mxu0
      %v844 = vadd.f32 %v763, %v843
      %v845 = vpop.f32.mrf.mxu0
      %846 = vmatprep.mubr.bf16.mxu0 0
      %847 = vmatmul.mubr.bf16.gmra.mxu0 %v793
      %v848 = vpop.f32.mrf.mxu0
      %v849 = vadd.f32 %v763, %v848
      %v850 = vpop.f32.mrf.mxu0
      %v851 = vpop.f32.mrf.mxu0
      %v852 = vadd.f32 %v763, %v851
      %v853 = vpop.f32.mrf.mxu0
      %854 = vmatprep.mubr.bf16.mxu0 0
      %855 = vmatmul.mubr.bf16.gmra.mxu0 %v796
      %v856 = vpop.f32.mrf.mxu0
      %v857 = vadd.f32 %v763, %v856
      %v858 = vpop.f32.mrf.mxu0
      %v859 = vpop.f32.mrf.mxu0
      %v860 = vadd.f32 %v763, %v859
      %v861 = vpop.f32.mrf.mxu0
      %862 = vdwg.mxu0
      %v863 = vmax.f32 %v833, 0.0
      %v864 = vmax.f32 %v836, 0.0
      %v865 = vmax.f32 %v841, 0.0
      %v866 = vmax.f32 %v844, 0.0
      %v867 = vmax.f32 %v849, 0.0
      %v868 = vmax.f32 %v852, 0.0
      %v869 = vmax.f32 %v857, 0.0
      %v870 = vmax.f32 %v860, 0.0
      %v871 = vpack.c.bf16 %v864, %v863
      %v872 = vpack.c.bf16 %v866, %v865
      %v873 = vpack.c.bf16 %v868, %v867
      %v874 = vpack.c.bf16 %v870, %v869
      %v875 = vld [vmem:[%s6] sm:$0xf]
      %v876 = vld [vmem:[%s6 + $0x4] sm:$0xf]
      %v877 = vld [vmem:[%s6 + $0x8] sm:$0xf]
      %v878 = vld [vmem:[%s6 + $0xc] sm:$0xf]
      %v883 = vunpack.c.l.b16 %v875
      %v884 = vunpack.c.l.b16 %v876
      %v885 = vunpack.c.l.b16 %v877
      %v886 = vunpack.c.l.b16 %v878
      %v887 = vpack.c.b16 %v884, %v883
      %v888 = vpack.c.b16 %v886, %v885
      %vm891 = vcmask 261120
      %v893 = vsel %vm891, %v871, 0
      %v896 = vsel %vm891, %v872, 0
      %v899 = vsel %vm891, %v873, 0
      %v902 = vsel %vm891, %v874, 0
      %904 = vmatprep.subr.bf16.mxu0 0
      %905 = vmatpush1.bf16.msra.mxu0 0
      %906 = vmatprep.subr.bf16.mxu0 0
      %907 = vmatpush1.bf16.msra.mxu0 0
      %908 = vmatprep.subr.bf16.mxu0 0
      %909 = vmatpush1.bf16.msra.mxu0 0
      %910 = vmatprep.subr.bf16.mxu0 0
      %911 = vmatpush1.bf16.msra.mxu0 0
      %912 = vmatprep.subr.bf16.mxu0 0
      %913 = vmatpush1.bf16.msra.mxu0 0
      %914 = vmatprep.subr.bf16.mxu0 0
      %915 = vmatpush1.bf16.msra.mxu0 0
      %916 = vmatprep.subr.bf16.mxu0 0
      %917 = vmatpush1.bf16.msra.mxu0 %v888
      %918 = vmatprep.subr.bf16.mxu0 0
      %919 = vmatpush1.bf16.msra.mxu0 %v887
      %920 = vmatprep.subr.bf16.mxu0 0
      %921 = vmatpush2.bf16.msra.mxu0 0
      %922 = vmatprep.subr.bf16.mxu0 0
      %923 = vmatpush2.bf16.msra.mxu0 0
      %924 = vmatprep.subr.bf16.mxu0 0
      %925 = vmatpush2.bf16.msra.mxu0 0
      %926 = vmatprep.subr.bf16.mxu0 0
      %927 = vmatpush2.bf16.msra.mxu0 0
      %928 = vmatprep.subr.bf16.mxu0 0
      %929 = vmatpush2.bf16.msra.mxu0 0
      %930 = vmatprep.subr.bf16.mxu0 0
      %931 = vmatpush2.bf16.msra.mxu0 0
      %932 = vmatprep.subr.bf16.mxu0 0
      %933 = vmatpush2.bf16.msra.mxu0 0
      %934 = vmatprep.subr.bf16.mxu0 0
      %935 = vmatpush2.bf16.msra.mxu0 0
      %936 = vmatprep.mubr.bf16.mxu0 0
      %937 = vmatmul.mubr.bf16.gmra.mxu0 %v893
      %v938 = vpop.f32.mrf.mxu0
      %v939 = vadd.f32 0.0, %v938
      %v940 = vpop.f32.mrf.mxu0
      %v941 = vpop.f32.mrf.mxu0
      %v942 = vadd.f32 0.0, %v941
      %v943 = vpop.f32.mrf.mxu0
      %944 = vmatprep.mubr.bf16.mxu0 0
      %945 = vmatmul.mubr.bf16.gmra.mxu0 %v896
      %v946 = vpop.f32.mrf.mxu0
      %v947 = vadd.f32 0.0, %v946
      %v948 = vpop.f32.mrf.mxu0
      %v949 = vpop.f32.mrf.mxu0
      %v950 = vadd.f32 0.0, %v949
      %v951 = vpop.f32.mrf.mxu0
      %952 = vmatprep.mubr.bf16.mxu0 0
      %953 = vmatmul.mubr.bf16.gmra.mxu0 %v899
      %v954 = vpop.f32.mrf.mxu0
      %v955 = vadd.f32 0.0, %v954
      %v956 = vpop.f32.mrf.mxu0
      %v957 = vpop.f32.mrf.mxu0
      %v958 = vadd.f32 0.0, %v957
      %v959 = vpop.f32.mrf.mxu0
      %960 = vmatprep.mubr.bf16.mxu0 0
      %961 = vmatmul.mubr.bf16.gmra.mxu0 %v902
      %v962 = vpop.f32.mrf.mxu0
      %v963 = vadd.f32 0.0, %v962
      %v964 = vpop.f32.mrf.mxu0
      %v965 = vpop.f32.mrf.mxu0
      %v966 = vadd.f32 0.0, %v965
      %v967 = vpop.f32.mrf.mxu0
      %968 = vdwg.mxu0
      %v969 = vpack.c.bf16 %v942, %v939
      %v970 = vpack.c.bf16 %v950, %v947
      %v971 = vpack.c.bf16 %v958, %v955
      %v972 = vpack.c.bf16 %v966, %v963
      %v973 = vld [vmem:[%s7] sm:$0x1]
      %v975 = vlaneseq
      %v976 = vshrl.u32 %v975, 7
      %v977 = vsub.s32 0, %v976
      %v978 = vrot.slane %v973, %v977
      %980 = vmatprep.subr.bf16.mxu0 0
      %981 = vmatpush1.bf16.msra.mxu0 0
      %982 = vmatprep.subr.bf16.mxu0 0
      %983 = vmatpush1.bf16.msra.mxu0 0
      %984 = vmatprep.subr.bf16.mxu0 0
      %985 = vmatpush1.bf16.msra.mxu0 0
      %986 = vmatprep.subr.bf16.mxu0 0
      %987 = vmatpush1.bf16.msra.mxu0 0
      %988 = vmatprep.subr.bf16.mxu0 0
      %989 = vmatpush1.bf16.msra.mxu0 %v972
      %990 = vmatprep.subr.bf16.mxu0 0
      %991 = vmatpush1.bf16.msra.mxu0 %v971
      %992 = vmatprep.subr.bf16.mxu0 0
      %993 = vmatpush1.bf16.msra.mxu0 %v970
      %994 = vmatprep.subr.bf16.mxu0 0
      %995 = vmatpush1.bf16.msra.mxu0 %v969
      %996 = vmatprep.subr.bf16.mxu0 0
      %997 = vmatpush2.bf16.msra.mxu0 0
      %998 = vmatprep.subr.bf16.mxu0 0
      %999 = vmatpush2.bf16.msra.mxu0 0
      %1000 = vmatprep.subr.bf16.mxu0 0
      %1001 = vmatpush2.bf16.msra.mxu0 0
      %1002 = vmatprep.subr.bf16.mxu0 0
      %1003 = vmatpush2.bf16.msra.mxu0 0
      %1004 = vmatprep.subr.bf16.mxu0 0
      %1005 = vmatpush2.bf16.msra.mxu0 0
      %1006 = vmatprep.subr.bf16.mxu0 0
      %1007 = vmatpush2.bf16.msra.mxu0 0
      %1008 = vmatprep.subr.bf16.mxu0 0
      %1009 = vmatpush2.bf16.msra.mxu0 0
      %1010 = vmatprep.subr.bf16.mxu0 0
      %1011 = vmatpush2.bf16.msra.mxu0 0
      %1012 = vmatprep.mubr.bf16.mxu0 0
      %1013 = vmatmul.mubr.bf16.gmra.mxu0 %v787
      %v1014 = vpop.f32.mrf.mxu0
      %v1015 = vadd.f32 %v978, %v1014
      %v1016 = vpop.f32.mrf.mxu0
      %v1017 = vpop.f32.mrf.mxu0
      %v1018 = vadd.f32 %v978, %v1017
      %v1019 = vpop.f32.mrf.mxu0
      %1020 = vmatprep.mubr.bf16.mxu0 0
      %1021 = vmatmul.mubr.bf16.gmra.mxu0 %v790
      %v1022 = vpop.f32.mrf.mxu0
      %v1023 = vadd.f32 %v978, %v1022
      %v1024 = vpop.f32.mrf.mxu0
      %v1025 = vpop.f32.mrf.mxu0
      %v1026 = vadd.f32 %v978, %v1025
      %v1027 = vpop.f32.mrf.mxu0
      %1028 = vmatprep.mubr.bf16.mxu0 0
      %1029 = vmatmul.mubr.bf16.gmra.mxu0 %v793
      %v1030 = vpop.f32.mrf.mxu0
      %v1031 = vadd.f32 %v978, %v1030
      %v1032 = vpop.f32.mrf.mxu0
      %v1033 = vpop.f32.mrf.mxu0
      %v1034 = vadd.f32 %v978, %v1033
      %v1035 = vpop.f32.mrf.mxu0
      %1036 = vmatprep.mubr.bf16.mxu0 0
      %1037 = vmatmul.mubr.bf16.gmra.mxu0 %v796
      %v1038 = vpop.f32.mrf.mxu0
      %v1039 = vadd.f32 %v978, %v1038
      %v1040 = vpop.f32.mrf.mxu0
      %v1041 = vpop.f32.mrf.mxu0
      %v1042 = vadd.f32 %v978, %v1041
      %v1043 = vpop.f32.mrf.mxu0
      %1044 = vdwg.mxu0
      %v1045 = vmax.f32 %v1015, 0.0
      %v1046 = vmax.f32 %v1018, 0.0
      %v1047 = vmax.f32 %v1023, 0.0
      %v1048 = vmax.f32 %v1026, 0.0
      %v1049 = vmax.f32 %v1031, 0.0
      %v1050 = vmax.f32 %v1034, 0.0
      %v1051 = vmax.f32 %v1039, 0.0
      %v1052 = vmax.f32 %v1042, 0.0
      %v1053 = vpack.c.bf16 %v1046, %v1045
      %v1054 = vpack.c.bf16 %v1048, %v1047
      %v1055 = vpack.c.bf16 %v1050, %v1049
      %v1056 = vpack.c.bf16 %v1052, %v1051
      %v1057 = vld [vmem:[%s8] sm:$0xf]
      %v1058 = vld [vmem:[%s8 + $0x4] sm:$0xf]
      %v1059 = vld [vmem:[%s8 + $0x8] sm:$0xf]
      %v1060 = vld [vmem:[%s8 + $0xc] sm:$0xf]
      %v1065 = vunpack.c.l.b16 %v1057
      %v1066 = vunpack.c.l.b16 %v1058
      %v1067 = vunpack.c.l.b16 %v1059
      %v1068 = vunpack.c.l.b16 %v1060
      %v1069 = vpack.c.b16 %v1066, %v1065
      %v1070 = vpack.c.b16 %v1068, %v1067
      %v1074 = vsel %vm891, %v1053, 0
      %v1077 = vsel %vm891, %v1054, 0
      %v1080 = vsel %vm891, %v1055, 0
      %v1083 = vsel %vm891, %v1056, 0
      %1085 = vmatprep.subr.bf16.mxu0 0
      %1086 = vmatpush1.bf16.msra.mxu0 0
      %1087 = vmatprep.subr.bf16.mxu0 0
      %1088 = vmatpush1.bf16.msra.mxu0 0
      %1089 = vmatprep.subr.bf16.mxu0 0
      %1090 = vmatpush1.bf16.msra.mxu0 0
      %1091 = vmatprep.subr.bf16.mxu0 0
      %1092 = vmatpush1.bf16.msra.mxu0 0
      %1093 = vmatprep.subr.bf16.mxu0 0
      %1094 = vmatpush1.bf16.msra.mxu0 0
      %1095 = vmatprep.subr.bf16.mxu0 0
      %1096 = vmatpush1.bf16.msra.mxu0 0
      %1097 = vmatprep.subr.bf16.mxu0 0
      %1098 = vmatpush1.bf16.msra.mxu0 %v1070
      %1099 = vmatprep.subr.bf16.mxu0 0
      %1100 = vmatpush1.bf16.msra.mxu0 %v1069
      %1101 = vmatprep.subr.bf16.mxu0 0
      %1102 = vmatpush2.bf16.msra.mxu0 0
      %1103 = vmatprep.subr.bf16.mxu0 0
      %1104 = vmatpush2.bf16.msra.mxu0 0
      %1105 = vmatprep.subr.bf16.mxu0 0
      %1106 = vmatpush2.bf16.msra.mxu0 0
      %1107 = vmatprep.subr.bf16.mxu0 0
      %1108 = vmatpush2.bf16.msra.mxu0 0
      %1109 = vmatprep.subr.bf16.mxu0 0
      %1110 = vmatpush2.bf16.msra.mxu0 0
      %1111 = vmatprep.subr.bf16.mxu0 0
      %1112 = vmatpush2.bf16.msra.mxu0 0
      %1113 = vmatprep.subr.bf16.mxu0 0
      %1114 = vmatpush2.bf16.msra.mxu0 0
      %1115 = vmatprep.subr.bf16.mxu0 0
      %1116 = vmatpush2.bf16.msra.mxu0 0
      %1117 = vmatprep.mubr.bf16.mxu0 0
      %1118 = vmatmul.mubr.bf16.gmra.mxu0 %v1074
      %v1119 = vpop.f32.mrf.mxu0
      %v1120 = vadd.f32 0.0, %v1119
      %v1121 = vpop.f32.mrf.mxu0
      %v1122 = vpop.f32.mrf.mxu0
      %v1123 = vadd.f32 0.0, %v1122
      %v1124 = vpop.f32.mrf.mxu0
      %1125 = vmatprep.mubr.bf16.mxu0 0
      %1126 = vmatmul.mubr.bf16.gmra.mxu0 %v1077
      %v1127 = vpop.f32.mrf.mxu0
      %v1128 = vadd.f32 0.0, %v1127
      %v1129 = vpop.f32.mrf.mxu0
      %v1130 = vpop.f32.mrf.mxu0
      %v1131 = vadd.f32 0.0, %v1130
      %v1132 = vpop.f32.mrf.mxu0
      %1133 = vmatprep.mubr.bf16.mxu0 0
      %1134 = vmatmul.mubr.bf16.gmra.mxu0 %v1080
      %v1135 = vpop.f32.mrf.mxu0
      %v1136 = vadd.f32 0.0, %v1135
      %v1137 = vpop.f32.mrf.mxu0
      %v1138 = vpop.f32.mrf.mxu0
      %v1139 = vadd.f32 0.0, %v1138
      %v1140 = vpop.f32.mrf.mxu0
      %1141 = vmatprep.mubr.bf16.mxu0 0
      %1142 = vmatmul.mubr.bf16.gmra.mxu0 %v1083
      %v1143 = vpop.f32.mrf.mxu0
      %v1144 = vadd.f32 0.0, %v1143
      %v1145 = vpop.f32.mrf.mxu0
      %v1146 = vpop.f32.mrf.mxu0
      %v1147 = vadd.f32 0.0, %v1146
      %v1148 = vpop.f32.mrf.mxu0
      %1149 = vdwg.mxu0
      %v1150 = vpack.c.bf16 %v1123, %v1120
      %v1151 = vpack.c.bf16 %v1131, %v1128
      %v1152 = vpack.c.bf16 %v1139, %v1136
      %v1153 = vpack.c.bf16 %v1147, %v1144
      %v1154 = vld [vmem:[%s9] sm:$0x1]
      %v1156 = vlaneseq
      %v1157 = vshrl.u32 %v1156, 7
      %v1158 = vsub.s32 0, %v1157
      %v1159 = vrot.slane %v1154, %v1158
      %1161 = vmatprep.subr.bf16.mxu0 0
      %1162 = vmatpush1.bf16.msra.mxu0 0
      %1163 = vmatprep.subr.bf16.mxu0 0
      %1164 = vmatpush1.bf16.msra.mxu0 0
      %1165 = vmatprep.subr.bf16.mxu0 0
      %1166 = vmatpush1.bf16.msra.mxu0 0
      %1167 = vmatprep.subr.bf16.mxu0 0
      %1168 = vmatpush1.bf16.msra.mxu0 0
      %1169 = vmatprep.subr.bf16.mxu0 0
      %1170 = vmatpush1.bf16.msra.mxu0 %v1153
      %1171 = vmatprep.subr.bf16.mxu0 0
      %1172 = vmatpush1.bf16.msra.mxu0 %v1152
      %1173 = vmatprep.subr.bf16.mxu0 0
      %1174 = vmatpush1.bf16.msra.mxu0 %v1151
      %1175 = vmatprep.subr.bf16.mxu0 0
      %1176 = vmatpush1.bf16.msra.mxu0 %v1150
      %1177 = vmatprep.subr.bf16.mxu0 0
      %1178 = vmatpush2.bf16.msra.mxu0 0
      %1179 = vmatprep.subr.bf16.mxu0 0
      %1180 = vmatpush2.bf16.msra.mxu0 0
      %1181 = vmatprep.subr.bf16.mxu0 0
      %1182 = vmatpush2.bf16.msra.mxu0 0
      %1183 = vmatprep.subr.bf16.mxu0 0
      %1184 = vmatpush2.bf16.msra.mxu0 0
      %1185 = vmatprep.subr.bf16.mxu0 0
      %1186 = vmatpush2.bf16.msra.mxu0 0
      %1187 = vmatprep.subr.bf16.mxu0 0
      %1188 = vmatpush2.bf16.msra.mxu0 0
      %1189 = vmatprep.subr.bf16.mxu0 0
      %1190 = vmatpush2.bf16.msra.mxu0 0
      %1191 = vmatprep.subr.bf16.mxu0 0
      %1192 = vmatpush2.bf16.msra.mxu0 0
      %1193 = vmatprep.mubr.bf16.mxu0 0
      %1194 = vmatmul.mubr.bf16.gmra.mxu0 %v787
      %v1195 = vpop.f32.mrf.mxu0
      %v1196 = vadd.f32 %v1159, %v1195
      %v1197 = vpop.f32.mrf.mxu0
      %v1198 = vpop.f32.mrf.mxu0
      %v1199 = vadd.f32 %v1159, %v1198
      %v1200 = vpop.f32.mrf.mxu0
      %1201 = vmatprep.mubr.bf16.mxu0 0
      %1202 = vmatmul.mubr.bf16.gmra.mxu0 %v790
      %v1203 = vpop.f32.mrf.mxu0
      %v1204 = vadd.f32 %v1159, %v1203
      %v1205 = vpop.f32.mrf.mxu0
      %v1206 = vpop.f32.mrf.mxu0
      %v1207 = vadd.f32 %v1159, %v1206
      %v1208 = vpop.f32.mrf.mxu0
      %1209 = vmatprep.mubr.bf16.mxu0 0
      %1210 = vmatmul.mubr.bf16.gmra.mxu0 %v793
      %v1211 = vpop.f32.mrf.mxu0
      %v1212 = vadd.f32 %v1159, %v1211
      %v1213 = vpop.f32.mrf.mxu0
      %v1214 = vpop.f32.mrf.mxu0
      %v1215 = vadd.f32 %v1159, %v1214
      %v1216 = vpop.f32.mrf.mxu0
      %1217 = vmatprep.mubr.bf16.mxu0 0
      %1218 = vmatmul.mubr.bf16.gmra.mxu0 %v796
      %v1219 = vpop.f32.mrf.mxu0
      %v1220 = vadd.f32 %v1159, %v1219
      %v1221 = vpop.f32.mrf.mxu0
      %v1222 = vpop.f32.mrf.mxu0
      %v1223 = vadd.f32 %v1159, %v1222
      %v1224 = vpop.f32.mrf.mxu0
      %1225 = vdwg.mxu0
      %v1226 = vmax.f32 %v1196, 0.0
      %v1227 = vmax.f32 %v1199, 0.0
      %v1228 = vmax.f32 %v1204, 0.0
      %v1229 = vmax.f32 %v1207, 0.0
      %v1230 = vmax.f32 %v1212, 0.0
      %v1231 = vmax.f32 %v1215, 0.0
      %v1232 = vmax.f32 %v1220, 0.0
      %v1233 = vmax.f32 %v1223, 0.0
      %1242 = vrot.lane.b32.xlu0 %v1045, 32
      %v1243 = vpop.permute.xlu0 %1242
      %1244 = vrot.lane.b32.xlu0 %v1046, 32
      %v1245 = vpop.permute.xlu0 %1244
      %1246 = vrot.lane.b32.xlu0 %v1047, 32
      %v1247 = vpop.permute.xlu0 %1246
      %1248 = vrot.lane.b32.xlu0 %v1048, 32
      %v1249 = vpop.permute.xlu0 %1248
      %1250 = vrot.lane.b32.xlu0 %v1049, 32
      %v1251 = vpop.permute.xlu0 %1250
      %1252 = vrot.lane.b32.xlu0 %v1050, 32
      %v1253 = vpop.permute.xlu0 %1252
      %1254 = vrot.lane.b32.xlu0 %v1051, 32
      %v1255 = vpop.permute.xlu0 %1254
      %1256 = vrot.lane.b32.xlu0 %v1052, 32
      %v1257 = vpop.permute.xlu0 %1256
      %1274 = vrot.lane.b32.xlu0 %v1226, 64
      %v1275 = vpop.permute.xlu0 %1274
      %1276 = vrot.lane.b32.xlu0 %v1227, 64
      %v1277 = vpop.permute.xlu0 %1276
      %1278 = vrot.lane.b32.xlu0 %v1228, 64
      %v1279 = vpop.permute.xlu0 %1278
      %1280 = vrot.lane.b32.xlu0 %v1229, 64
      %v1281 = vpop.permute.xlu0 %1280
      %1282 = vrot.lane.b32.xlu0 %v1230, 64
      %v1283 = vpop.permute.xlu0 %1282
      %1284 = vrot.lane.b32.xlu0 %v1231, 64
      %v1285 = vpop.permute.xlu0 %1284
      %1286 = vrot.lane.b32.xlu0 %v1232, 64
      %v1287 = vpop.permute.xlu0 %1286
      %1288 = vrot.lane.b32.xlu0 %v1233, 64
      %v1289 = vpop.permute.xlu0 %1288
      %v1298 = vsel %vm891, %v863, %v1243
      %v1299 = vsel %vm891, %v864, %v1245
      %v1300 = vsel %vm891, %v865, %v1247
      %v1301 = vsel %vm891, %v866, %v1249
      %v1302 = vsel %vm891, %v867, %v1251
      %v1303 = vsel %vm891, %v868, %v1253
      %v1304 = vsel %vm891, %v869, %v1255
      %v1305 = vsel %vm891, %v870, %v1257
      %v1306 = vsel %vm785, %v1298, %v1275
      %v1307 = vsel %vm785, %v1299, %v1277
      %v1308 = vsel %vm785, %v1300, %v1279
      %v1309 = vsel %vm785, %v1301, %v1281
      %v1310 = vsel %vm785, %v1302, %v1283
      %v1311 = vsel %vm785, %v1303, %v1285
      %v1312 = vsel %vm785, %v1304, %v1287
      %v1313 = vsel %vm785, %v1305, %v1289
      %v1314 = vpack.c.bf16 %v1307, %v1306
      %v1315 = vpack.c.bf16 %v1309, %v1308
      %v1316 = vpack.c.bf16 %v1311, %v1310
      %v1317 = vpack.c.bf16 %v1313, %v1312
      %v1318 = vld [vmem:[%s10] sm:$0xf]
      %v1319 = vld [vmem:[%s10 + $0x4] sm:$0xf]
      %v1320 = vld [vmem:[%s10 + $0x8] sm:$0xf]
      %v1321 = vld [vmem:[%s10 + $0xc] sm:$0xf]
      %v1322 = vld [vmem:[%s10 + $0x10] sm:$0xf]
      %v1323 = vld [vmem:[%s10 + $0x14] sm:$0xf]
      %v1324 = vld [vmem:[%s10 + $0x18] sm:$0xf]
      %v1325 = vld [vmem:[%s10 + $0x1c] sm:$0xf]
      %v1326 = vld [vmem:[%s10 + $0x20] sm:$0xf]
      %v1327 = vld [vmem:[%s10 + $0x24] sm:$0xf]
      %v1328 = vld [vmem:[%s10 + $0x28] sm:$0xf]
      %v1329 = vld [vmem:[%s10 + $0x2c] sm:$0xf]
      %v1342 = vunpack.c.l.b16 %v1318
      %v1343 = vunpack.c.l.b16 %v1319
      %v1344 = vunpack.c.l.b16 %v1320
      %v1345 = vunpack.c.l.b16 %v1321
      %v1346 = vunpack.c.l.b16 %v1322
      %v1347 = vunpack.c.l.b16 %v1323
      %v1348 = vunpack.c.l.b16 %v1324
      %v1349 = vunpack.c.l.b16 %v1325
      %v1350 = vunpack.c.l.b16 %v1326
      %v1351 = vunpack.c.l.b16 %v1327
      %v1352 = vunpack.c.l.b16 %v1328
      %v1353 = vunpack.c.l.b16 %v1329
      %v1354 = vpack.c.b16 %v1343, %v1342
      %v1355 = vpack.c.b16 %v1345, %v1344
      %v1356 = vpack.c.b16 %v1347, %v1346
      %v1357 = vpack.c.b16 %v1349, %v1348
      %v1358 = vpack.c.b16 %v1351, %v1350
      %v1359 = vpack.c.b16 %v1353, %v1352
      %vm1366 = vcmask 785408
      %v1368 = vsel %vm1366, %v1314, 0
      %v1371 = vsel %vm1366, %v1315, 0
      %v1374 = vsel %vm1366, %v1316, 0
      %v1377 = vsel %vm1366, %v1317, 0
      %1379 = vmatprep.subr.bf16.mxu0 0
      %1380 = vmatpush1.bf16.msra.mxu0 0
      %1381 = vmatprep.subr.bf16.mxu0 0
      %1382 = vmatpush1.bf16.msra.mxu0 0
      %1383 = vmatprep.subr.bf16.mxu0 0
      %1384 = vmatpush1.bf16.msra.mxu0 %v1359
      %1385 = vmatprep.subr.bf16.mxu0 0
      %1386 = vmatpush1.bf16.msra.mxu0 %v1358
      %1387 = vmatprep.subr.bf16.mxu0 0
      %1388 = vmatpush1.bf16.msra.mxu0 %v1357
      %1389 = vmatprep.subr.bf16.mxu0 0
      %1390 = vmatpush1.bf16.msra.mxu0 %v1356
      %1391 = vmatprep.subr.bf16.mxu0 0
      %1392 = vmatpush1.bf16.msra.mxu0 %v1355
      %1393 = vmatprep.subr.bf16.mxu0 0
      %1394 = vmatpush1.bf16.msra.mxu0 %v1354
      %1395 = vmatprep.subr.bf16.mxu0 0
      %1396 = vmatpush2.bf16.msra.mxu0 0
      %1397 = vmatprep.subr.bf16.mxu0 0
      %1398 = vmatpush2.bf16.msra.mxu0 0
      %1399 = vmatprep.subr.bf16.mxu0 0
      %1400 = vmatpush2.bf16.msra.mxu0 0
      %1401 = vmatprep.subr.bf16.mxu0 0
      %1402 = vmatpush2.bf16.msra.mxu0 0
      %1403 = vmatprep.subr.bf16.mxu0 0
      %1404 = vmatpush2.bf16.msra.mxu0 0
      %1405 = vmatprep.subr.bf16.mxu0 0
      %1406 = vmatpush2.bf16.msra.mxu0 0
      %1407 = vmatprep.subr.bf16.mxu0 0
      %1408 = vmatpush2.bf16.msra.mxu0 0
      %1409 = vmatprep.subr.bf16.mxu0 0
      %1410 = vmatpush2.bf16.msra.mxu0 0
      %1411 = vmatprep.mubr.bf16.mxu0 0
      %1412 = vmatmul.mubr.bf16.gmra.mxu0 %v1368
      %v1413 = vpop.f32.mrf.mxu0
      %v1414 = vadd.f32 0.0, %v1413
      %v1415 = vpop.f32.mrf.mxu0
      %v1416 = vpop.f32.mrf.mxu0
      %v1417 = vadd.f32 0.0, %v1416
      %v1418 = vpop.f32.mrf.mxu0
      %1419 = vmatprep.mubr.bf16.mxu0 0
      %1420 = vmatmul.mubr.bf16.gmra.mxu0 %v1371
      %v1421 = vpop.f32.mrf.mxu0
      %v1422 = vadd.f32 0.0, %v1421
      %v1423 = vpop.f32.mrf.mxu0
      %v1424 = vpop.f32.mrf.mxu0
      %v1425 = vadd.f32 0.0, %v1424
      %v1426 = vpop.f32.mrf.mxu0
      %1427 = vmatprep.mubr.bf16.mxu0 0
      %1428 = vmatmul.mubr.bf16.gmra.mxu0 %v1374
      %v1429 = vpop.f32.mrf.mxu0
      %v1430 = vadd.f32 0.0, %v1429
      %v1431 = vpop.f32.mrf.mxu0
      %v1432 = vpop.f32.mrf.mxu0
      %v1433 = vadd.f32 0.0, %v1432
      %v1434 = vpop.f32.mrf.mxu0
      %1435 = vmatprep.mubr.bf16.mxu0 0
      %1436 = vmatmul.mubr.bf16.gmra.mxu0 %v1377
      %v1437 = vpop.f32.mrf.mxu0
      %v1438 = vadd.f32 0.0, %v1437
      %v1439 = vpop.f32.mrf.mxu0
      %v1440 = vpop.f32.mrf.mxu0
      %v1441 = vadd.f32 0.0, %v1440
      %v1442 = vpop.f32.mrf.mxu0
      %1443 = vdwg.mxu0
      %v1444 = vpack.c.bf16 %v1417, %v1414
      %v1445 = vpack.c.bf16 %v1425, %v1422
      %v1446 = vpack.c.bf16 %v1433, %v1430
      %v1447 = vpack.c.bf16 %v1441, %v1438
      %v1448 = vld [vmem:[%s11] sm:$0x1]
      %v1450 = vlaneseq
      %v1451 = vshrl.u32 %v1450, 7
      %v1452 = vsub.s32 0, %v1451
      %v1453 = vrot.slane %v1448, %v1452
      %1455 = vmatprep.subr.bf16.mxu0 0
      %1456 = vmatpush1.bf16.msra.mxu0 0
      %1457 = vmatprep.subr.bf16.mxu0 0
      %1458 = vmatpush1.bf16.msra.mxu0 0
      %1459 = vmatprep.subr.bf16.mxu0 0
      %1460 = vmatpush1.bf16.msra.mxu0 0
      %1461 = vmatprep.subr.bf16.mxu0 0
      %1462 = vmatpush1.bf16.msra.mxu0 0
      %1463 = vmatprep.subr.bf16.mxu0 0
      %1464 = vmatpush1.bf16.msra.mxu0 %v1447
      %1465 = vmatprep.subr.bf16.mxu0 0
      %1466 = vmatpush1.bf16.msra.mxu0 %v1446
      %1467 = vmatprep.subr.bf16.mxu0 0
      %1468 = vmatpush1.bf16.msra.mxu0 %v1445
      %1469 = vmatprep.subr.bf16.mxu0 0
      %1470 = vmatpush1.bf16.msra.mxu0 %v1444
      %1471 = vmatprep.subr.bf16.mxu0 0
      %1472 = vmatpush2.bf16.msra.mxu0 0
      %1473 = vmatprep.subr.bf16.mxu0 0
      %1474 = vmatpush2.bf16.msra.mxu0 0
      %1475 = vmatprep.subr.bf16.mxu0 0
      %1476 = vmatpush2.bf16.msra.mxu0 0
      %1477 = vmatprep.subr.bf16.mxu0 0
      %1478 = vmatpush2.bf16.msra.mxu0 0
      %1479 = vmatprep.subr.bf16.mxu0 0
      %1480 = vmatpush2.bf16.msra.mxu0 0
      %1481 = vmatprep.subr.bf16.mxu0 0
      %1482 = vmatpush2.bf16.msra.mxu0 0
      %1483 = vmatprep.subr.bf16.mxu0 0
      %1484 = vmatpush2.bf16.msra.mxu0 0
      %1485 = vmatprep.subr.bf16.mxu0 0
      %1486 = vmatpush2.bf16.msra.mxu0 0
      %1487 = vmatprep.mubr.bf16.mxu0 0
      %1488 = vmatmul.mubr.bf16.gmra.mxu0 %v787
      %v1489 = vpop.f32.mrf.mxu0
      %v1490 = vadd.f32 %v1453, %v1489
      %v1491 = vpop.f32.mrf.mxu0
      %v1492 = vpop.f32.mrf.mxu0
      %v1493 = vadd.f32 %v1453, %v1492
      %v1494 = vpop.f32.mrf.mxu0
      %1495 = vmatprep.mubr.bf16.mxu0 0
      %1496 = vmatmul.mubr.bf16.gmra.mxu0 %v790
      %v1497 = vpop.f32.mrf.mxu0
      %v1498 = vadd.f32 %v1453, %v1497
      %v1499 = vpop.f32.mrf.mxu0
      %v1500 = vpop.f32.mrf.mxu0
      %v1501 = vadd.f32 %v1453, %v1500
      %v1502 = vpop.f32.mrf.mxu0
      %1503 = vmatprep.mubr.bf16.mxu0 0
      %1504 = vmatmul.mubr.bf16.gmra.mxu0 %v793
      %v1505 = vpop.f32.mrf.mxu0
      %v1506 = vadd.f32 %v1453, %v1505
      %v1507 = vpop.f32.mrf.mxu0
      %v1508 = vpop.f32.mrf.mxu0
      %v1509 = vadd.f32 %v1453, %v1508
      %v1510 = vpop.f32.mrf.mxu0
      %1511 = vmatprep.mubr.bf16.mxu0 0
      %1512 = vmatmul.mubr.bf16.gmra.mxu0 %v796
      %v1513 = vpop.f32.mrf.mxu0
      %v1514 = vadd.f32 %v1453, %v1513
      %v1515 = vpop.f32.mrf.mxu0
      %v1516 = vpop.f32.mrf.mxu0
      %v1517 = vadd.f32 %v1453, %v1516
      %v1518 = vpop.f32.mrf.mxu0
      %1519 = vdwg.mxu0
      %v1520 = vtanh.pop %v1490
      %v1521 = vtanh.pop %v1493
      %v1522 = vtanh.pop %v1498
      %v1523 = vtanh.pop %v1501
      %v1524 = vtanh.pop %v1506
      %v1525 = vtanh.pop %v1509
      %v1526 = vtanh.pop %v1514
      %v1527 = vtanh.pop %v1517
      %1528 = vxpose.xlu0.b32.start [1/16] %v1520, 128
      %1529 = vxpose.xlu0.b32.cont [2/16] %v1521, 128
      %1530 = vxpose.xlu0.b32.cont [3/16] %v1522, 128
      %1531 = vxpose.xlu0.b32.cont [4/16] %v1523, 128
      %1532 = vxpose.xlu0.b32.cont [5/16] %v1524, 128
      %1533 = vxpose.xlu0.b32.cont [6/16] %v1525, 128
      %1534 = vxpose.xlu0.b32.cont [7/16] %v1526, 128
      %1535 = vxpose.xlu0.b32.cont [8/16] %v1527, 128
      %1536 = vxpose.xlu0.b32.cont [9/16] 0.0, 128
      %1537 = vxpose.xlu0.b32.cont [10/16] 0.0, 128
      %1538 = vxpose.xlu0.b32.cont [11/16] 0.0, 128
      %1539 = vxpose.xlu0.b32.cont [12/16] 0.0, 128
      %1540 = vxpose.xlu0.b32.cont [13/16] 0.0, 128
      %1541 = vxpose.xlu0.b32.cont [14/16] 0.0, 128
      %1542 = vxpose.xlu0.b32.cont [15/16] 0.0, 128
      %1543 = vxpose.xlu0.b32.end [16/16] 0.0, 128
      %v1544 = vpop.trf.xlu0
      %v1545 = vpop.trf.xlu0
      %v1546 = vpop.trf.xlu0
      %v1547 = vpop.trf.xlu0
      %v1548 = vpop.trf.xlu0
      %v1549 = vpop.trf.xlu0
      %v1550 = vpop.trf.xlu0
      %v1551 = vpop.trf.xlu0
      %v1552 = vpop.trf.xlu0
      %v1553 = vpop.trf.xlu0
      %v1554 = vpop.trf.xlu0
      %v1555 = vpop.trf.xlu0
      %v1556 = vpop.trf.xlu0
      %v1557 = vpop.trf.xlu0
      %v1558 = vpop.trf.xlu0
      %v1559 = vpop.trf.xlu0
      %v1560 = vlaneseq
      %v1561 = vshrl.u32 %v1560, 7
      %v1562 = vadd.s32 %v1561, 8
      %v1563 = vadd.s32 %v1561, 16
      %v1564 = vadd.s32 %v1561, 24
      %v1565 = vadd.s32 %v1561, 32
      %v1566 = vadd.s32 %v1561, 40
      %v1567 = vadd.s32 %v1561, 48
      %v1568 = vadd.s32 %v1561, 56
      %v1569 = vlaneseq
      %v1570 = vand.u32 %v1569, 127
      %v1571 = vlaneseq
      %v1572 = vshrl.u32 %v1571, 7
      %v1573 = vsub.s32 0, %v1572
      %v1574 = vrot.slane %v1544, %v1573
      %1576 = vset.pattern.permute.xlu0 0
      %1577 = vperm.xlu0 %1576, %v1520
      %v1578 = vpop.permute.xlu0 %1577
      %1581 = vset.pattern.permute.xlu0 0
      %1582 = vperm.xlu0 %1581, %v1521
      %v1583 = vpop.permute.xlu0 %1582
      %1586 = vset.pattern.permute.xlu0 0
      %1587 = vperm.xlu0 %1586, %v1522
      %v1588 = vpop.permute.xlu0 %1587
      %1591 = vset.pattern.permute.xlu0 0
      %1592 = vperm.xlu0 %1591, %v1523
      %v1593 = vpop.permute.xlu0 %1592
      %1596 = vset.pattern.permute.xlu0 0
      %1597 = vperm.xlu0 %1596, %v1524
      %v1598 = vpop.permute.xlu0 %1597
      %1601 = vset.pattern.permute.xlu0 0
      %1602 = vperm.xlu0 %1601, %v1525
      %v1603 = vpop.permute.xlu0 %1602
      %1606 = vset.pattern.permute.xlu0 0
      %1607 = vperm.xlu0 %1606, %v1526
      %v1608 = vpop.permute.xlu0 %1607
      %1611 = vset.pattern.permute.xlu0 0
      %1612 = vperm.xlu0 %1611, %v1527
      %v1613 = vpop.permute.xlu0 %1612
      %vm1615 = vcmp.gt.f32.partialorder %v1574, %v1578
      %vm1616 = vcmp.gt.f32.partialorder %v1574, %v1583
      %vm1617 = vcmp.gt.f32.partialorder %v1574, %v1588
      %vm1618 = vcmp.gt.f32.partialorder %v1574, %v1593
      %vm1619 = vcmp.gt.f32.partialorder %v1574, %v1598
      %vm1620 = vcmp.gt.f32.partialorder %v1574, %v1603
      %vm1621 = vcmp.gt.f32.partialorder %v1574, %v1608
      %vm1622 = vcmp.gt.f32.partialorder %v1574, %v1613
      %vm1623 = vcmp.eq.f32.partialorder %v1574, %v1578
      %vm1624 = vcmp.eq.f32.partialorder %v1574, %v1583
      %vm1625 = vcmp.eq.f32.partialorder %v1574, %v1588
      %vm1626 = vcmp.eq.f32.partialorder %v1574, %v1593
      %vm1627 = vcmp.eq.f32.partialorder %v1574, %v1598
      %vm1628 = vcmp.eq.f32.partialorder %v1574, %v1603
      %vm1629 = vcmp.eq.f32.partialorder %v1574, %v1608
      %vm1630 = vcmp.eq.f32.partialorder %v1574, %v1613
      %vm1631 = vcmp.lt.s32.totalorder %v1570, %v1561
      %vm1632 = vcmp.lt.s32.totalorder %v1570, %v1562
      %vm1633 = vcmp.lt.s32.totalorder %v1570, %v1563
      %vm1634 = vcmp.lt.s32.totalorder %v1570, %v1564
      %vm1635 = vcmp.lt.s32.totalorder %v1570, %v1565
      %vm1636 = vcmp.lt.s32.totalorder %v1570, %v1566
      %vm1637 = vcmp.lt.s32.totalorder %v1570, %v1567
      %vm1638 = vcmp.lt.s32.totalorder %v1570, %v1568
      %vm1639 = vmand %vm1623, %vm1631
      %vm1640 = vmand %vm1624, %vm1632
      %vm1641 = vmand %vm1625, %vm1633
      %vm1642 = vmand %vm1626, %vm1634
      %vm1643 = vmand %vm1627, %vm1635
      %vm1644 = vmand %vm1628, %vm1636
      %vm1645 = vmand %vm1629, %vm1637
      %vm1646 = vmand %vm1630, %vm1638
      %vm1647 = vmor %vm1615, %vm1639
      %vm1648 = vmor %vm1616, %vm1640
      %vm1649 = vmor %vm1617, %vm1641
      %vm1650 = vmor %vm1618, %vm1642
      %vm1651 = vmor %vm1619, %vm1643
      %vm1652 = vmor %vm1620, %vm1644
      %vm1653 = vmor %vm1621, %vm1645
      %vm1654 = vmor %vm1622, %vm1646
      %v1655 = vsel %vm1647, 1, 0
      %v1656 = vsel %vm1648, 1, 0
      %v1657 = vsel %vm1649, 1, 0
      %v1658 = vsel %vm1650, 1, 0
      %v1659 = vsel %vm1651, 1, 0
      %v1660 = vsel %vm1652, 1, 0
      %v1661 = vsel %vm1653, 1, 0
      %v1662 = vsel %vm1654, 1, 0
      %v1663 = vcvt.s32.f32 %v1655
      %v1664 = vcvt.s32.f32 %v1656
      %v1665 = vcvt.s32.f32 %v1657
      %v1666 = vcvt.s32.f32 %v1658
      %v1667 = vcvt.s32.f32 %v1659
      %v1668 = vcvt.s32.f32 %v1660
      %v1669 = vcvt.s32.f32 %v1661
      %v1670 = vcvt.s32.f32 %v1662
      %v1671 = vpack.c.bf16 %v1664, %v1663
      %v1672 = vpack.c.bf16 %v1666, %v1665
      %v1673 = vpack.c.bf16 %v1668, %v1667
      %v1674 = vpack.c.bf16 %v1670, %v1669
      %v1675 = vld [vmem:[%s626] sm:$0xf]
      %v1676 = vld [vmem:[%s626 + $0x4] sm:$0xf]
      %v1677 = vld [vmem:[%s626 + $0x8] sm:$0xf]
      %v1678 = vld [vmem:[%s626 + $0xc] sm:$0xf]
      %v1679 = vld [vmem:[%s626 + $0x10] sm:$0xf]
      %v1680 = vld [vmem:[%s626 + $0x14] sm:$0xf]
      %v1681 = vld [vmem:[%s626 + $0x18] sm:$0xf]
      %v1682 = vld [vmem:[%s626 + $0x1c] sm:$0xf]
      %v1683 = vunpack.c.l.bf16 %v1675
      %v1684 = vunpack.c.l.bf16 %v1676
      %v1685 = vunpack.c.l.bf16 %v1677
      %v1686 = vunpack.c.l.bf16 %v1678
      %v1687 = vunpack.c.l.bf16 %v1679
      %v1688 = vunpack.c.l.bf16 %v1680
      %v1689 = vunpack.c.l.bf16 %v1681
      %v1690 = vunpack.c.l.bf16 %v1682
      %v1699 = vunpack.c.l.b16 %v1675
      %v1700 = vunpack.c.l.b16 %v1676
      %v1701 = vunpack.c.l.b16 %v1677
      %v1702 = vunpack.c.l.b16 %v1678
      %v1703 = vunpack.c.l.b16 %v1679
      %v1704 = vunpack.c.l.b16 %v1680
      %v1705 = vunpack.c.l.b16 %v1681
      %v1706 = vunpack.c.l.b16 %v1682
      %v1707 = vpack.c.b16 %v1700, %v1699
      %v1708 = vpack.c.b16 %v1702, %v1701
      %v1709 = vpack.c.b16 %v1704, %v1703
      %v1710 = vpack.c.b16 %v1706, %v1705
      %v1716 = vsel %vm785, %v1671, 0
      %v1719 = vsel %vm785, %v1672, 0
      %v1722 = vsel %vm785, %v1673, 0
      %v1725 = vsel %vm785, %v1674, 0
      %1727 = vmatprep.subr.bf16.mxu0 0
      %1728 = vmatpush1.bf16.msra.mxu0 0
      %1729 = vmatprep.subr.bf16.mxu0 0
      %1730 = vmatpush1.bf16.msra.mxu0 0
      %1731 = vmatprep.subr.bf16.mxu0 0
      %1732 = vmatpush1.bf16.msra.mxu0 0
      %1733 = vmatprep.subr.bf16.mxu0 0
      %1734 = vmatpush1.bf16.msra.mxu0 0
      %1735 = vmatprep.subr.bf16.mxu0 0
      %1736 = vmatpush1.bf16.msra.mxu0 %v1710
      %1737 = vmatprep.subr.bf16.mxu0 0
      %1738 = vmatpush1.bf16.msra.mxu0 %v1709
      %1739 = vmatprep.subr.bf16.mxu0 0
      %1740 = vmatpush1.bf16.msra.mxu0 %v1708
      %1741 = vmatprep.subr.bf16.mxu0 0
      %1742 = vmatpush1.bf16.msra.mxu0 %v1707
      %1743 = vmatprep.subr.bf16.mxu0 0
      %1744 = vmatpush2.bf16.msra.mxu0 0
      %1745 = vmatprep.subr.bf16.mxu0 0
      %1746 = vmatpush2.bf16.msra.mxu0 0
      %1747 = vmatprep.subr.bf16.mxu0 0
      %1748 = vmatpush2.bf16.msra.mxu0 0
      %1749 = vmatprep.subr.bf16.mxu0 0
      %1750 = vmatpush2.bf16.msra.mxu0 0
      %1751 = vmatprep.subr.bf16.mxu0 0
      %1752 = vmatpush2.bf16.msra.mxu0 0
      %1753 = vmatprep.subr.bf16.mxu0 0
      %1754 = vmatpush2.bf16.msra.mxu0 0
      %1755 = vmatprep.subr.bf16.mxu0 0
      %1756 = vmatpush2.bf16.msra.mxu0 0
      %1757 = vmatprep.subr.bf16.mxu0 0
      %1758 = vmatpush2.bf16.msra.mxu0 0
      %1759 = vmatprep.mubr.bf16.mxu0 0
      %1760 = vmatmul.mubr.bf16.gmra.mxu0 %v1716
      %v1761 = vpop.f32.mrf.mxu0
      %v1762 = vadd.f32 0.0, %v1761
      %v1763 = vpop.f32.mrf.mxu0
      %v1764 = vpop.f32.mrf.mxu0
      %v1765 = vadd.f32 0.0, %v1764
      %v1766 = vpop.f32.mrf.mxu0
      %1767 = vmatprep.mubr.bf16.mxu0 0
      %1768 = vmatmul.mubr.bf16.gmra.mxu0 %v1719
      %v1769 = vpop.f32.mrf.mxu0
      %v1770 = vadd.f32 0.0, %v1769
      %v1771 = vpop.f32.mrf.mxu0
      %v1772 = vpop.f32.mrf.mxu0
      %v1773 = vadd.f32 0.0, %v1772
      %v1774 = vpop.f32.mrf.mxu0
      %1775 = vmatprep.mubr.bf16.mxu0 0
      %1776 = vmatmul.mubr.bf16.gmra.mxu0 %v1722
      %v1777 = vpop.f32.mrf.mxu0
      %v1778 = vadd.f32 0.0, %v1777
      %v1779 = vpop.f32.mrf.mxu0
      %v1780 = vpop.f32.mrf.mxu0
      %v1781 = vadd.f32 0.0, %v1780
      %v1782 = vpop.f32.mrf.mxu0
      %1783 = vmatprep.mubr.bf16.mxu0 0
      %1784 = vmatmul.mubr.bf16.gmra.mxu0 %v1725
      %v1785 = vpop.f32.mrf.mxu0
      %v1786 = vadd.f32 0.0, %v1785
      %v1787 = vpop.f32.mrf.mxu0
      %v1788 = vpop.f32.mrf.mxu0
      %v1789 = vadd.f32 0.0, %v1788
      %v1790 = vpop.f32.mrf.mxu0
      %1791 = vdwg.mxu0
      %v1792 = vmul.f32 %v1683, %v1762
      %v1793 = vmul.f32 %v1684, %v1765
      %v1794 = vmul.f32 %v1685, %v1770
      %v1795 = vmul.f32 %v1686, %v1773
      %v1796 = vmul.f32 %v1687, %v1778
      %v1797 = vmul.f32 %v1688, %v1781
      %v1798 = vmul.f32 %v1689, %v1786
      %v1799 = vmul.f32 %v1690, %v1789
      %vm1800 = vcmask 31744
      %v1801 = vsel %vm1800, %v1792, 0.0
      %1802 = vadd.xlane.f32.xlu0 %v1801
      %v1803 = vpop.xlane.xlu0 %1802
      %v1804 = vsel %vm1800, %v1793, 0.0
      %1805 = vadd.xlane.f32.xlu0 %v1804
      %v1806 = vpop.xlane.xlu0 %1805
      %v1807 = vsel %vm1800, %v1794, 0.0
      %1808 = vadd.xlane.f32.xlu0 %v1807
      %v1809 = vpop.xlane.xlu0 %1808
      %v1810 = vsel %vm1800, %v1795, 0.0
      %1811 = vadd.xlane.f32.xlu0 %v1810
      %v1812 = vpop.xlane.xlu0 %1811
      %v1813 = vsel %vm1800, %v1796, 0.0
      %1814 = vadd.xlane.f32.xlu0 %v1813
      %v1815 = vpop.xlane.xlu0 %1814
      %v1816 = vsel %vm1800, %v1797, 0.0
      %1817 = vadd.xlane.f32.xlu0 %v1816
      %v1818 = vpop.xlane.xlu0 %1817
      %v1819 = vsel %vm1800, %v1798, 0.0
      %1820 = vadd.xlane.f32.xlu0 %v1819
      %v1821 = vpop.xlane.xlu0 %1820
      %v1822 = vsel %vm1800, %v1799, 0.0
      %1823 = vadd.xlane.f32.xlu0 %v1822
      %v1824 = vpop.xlane.xlu0 %1823
      %v1825 = vsel %vm1800, %v1683, 0.0
      %v1826 = vsel %vm1800, %v1684, 0.0
      %v1827 = vadd.f32 %v1825, %v1826
      %v1828 = vsel %vm1800, %v1685, 0.0
      %v1829 = vadd.f32 %v1827, %v1828
      %v1830 = vsel %vm1800, %v1686, 0.0
      %v1831 = vadd.f32 %v1829, %v1830
      %v1832 = vsel %vm1800, %v1687, 0.0
      %v1833 = vadd.f32 %v1831, %v1832
      %v1834 = vsel %vm1800, %v1688, 0.0
      %v1835 = vadd.f32 %v1833, %v1834
      %v1836 = vsel %vm1800, %v1689, 0.0
      %v1837 = vadd.f32 %v1835, %v1836
      %v1838 = vsel %vm1800, %v1690, 0.0
      %v1839 = vadd.f32 %v1837, %v1838
      %v1840 = vrot.slane %v1839, 4
      %v1841 = vadd.f32 %v1839, %v1840
      %v1842 = vrot.slane %v1841, 2
      %v1843 = vadd.f32 %v1841, %v1842
      %v1844 = vrot.slane %v1843, 1
      %v1845 = vadd.f32 %v1843, %v1844
      %v1846 = vmul.f32 %v1683, %v1845
      %v1847 = vmul.f32 %v1684, %v1845
      %v1848 = vmul.f32 %v1685, %v1845
      %v1849 = vmul.f32 %v1686, %v1845
      %v1850 = vmul.f32 %v1687, %v1845
      %v1851 = vmul.f32 %v1688, %v1845
      %v1852 = vmul.f32 %v1689, %v1845
      %v1853 = vmul.f32 %v1690, %v1845
      %v1854 = vsel %vm1800, %v1846, 0.0
      %1855 = vadd.xlane.f32.xlu0 %v1854
      %v1856 = vpop.xlane.xlu0 %1855
      %v1857 = vsel %vm1800, %v1847, 0.0
      %1858 = vadd.xlane.f32.xlu0 %v1857
      %v1859 = vpop.xlane.xlu0 %1858
      %v1860 = vsel %vm1800, %v1848, 0.0
      %1861 = vadd.xlane.f32.xlu0 %v1860
      %v1862 = vpop.xlane.xlu0 %1861
      %v1863 = vsel %vm1800, %v1849, 0.0
      %1864 = vadd.xlane.f32.xlu0 %v1863
      %v1865 = vpop.xlane.xlu0 %1864
      %v1866 = vsel %vm1800, %v1850, 0.0
      %1867 = vadd.xlane.f32.xlu0 %v1866
      %v1868 = vpop.xlane.xlu0 %1867
      %v1869 = vsel %vm1800, %v1851, 0.0
      %1870 = vadd.xlane.f32.xlu0 %v1869
      %v1871 = vpop.xlane.xlu0 %1870
      %v1872 = vsel %vm1800, %v1852, 0.0
      %1873 = vadd.xlane.f32.xlu0 %v1872
      %v1874 = vpop.xlane.xlu0 %1873
      %v1875 = vsel %vm1800, %v1853, 0.0
      %1876 = vadd.xlane.f32.xlu0 %v1875
      %v1877 = vpop.xlane.xlu0 %1876
      %v1878 = vmul.f32 %v1856, 0.5
      %v1879 = vmul.f32 %v1859, 0.5
      %v1880 = vmul.f32 %v1862, 0.5
      %v1881 = vmul.f32 %v1865, 0.5
      %v1882 = vmul.f32 %v1868, 0.5
      %v1883 = vmul.f32 %v1871, 0.5
      %v1884 = vmul.f32 %v1874, 0.5
      %v1885 = vmul.f32 %v1877, 0.5
      %v1886 = vfloor.f32 %v1878
      %v1887 = vfloor.f32 %v1879
      %v1888 = vfloor.f32 %v1880
      %v1889 = vfloor.f32 %v1881
      %v1890 = vfloor.f32 %v1882
      %v1891 = vfloor.f32 %v1883
      %v1892 = vfloor.f32 %v1884
      %v1893 = vfloor.f32 %v1885
      %vm1894 = vcmp.lt.f32.partialorder %v1803, %v1886
      %vm1895 = vcmp.lt.f32.partialorder %v1806, %v1887
      %vm1896 = vcmp.lt.f32.partialorder %v1809, %v1888
      %vm1897 = vcmp.lt.f32.partialorder %v1812, %v1889
      %vm1898 = vcmp.lt.f32.partialorder %v1815, %v1890
      %vm1899 = vcmp.lt.f32.partialorder %v1818, %v1891
      %vm1900 = vcmp.lt.f32.partialorder %v1821, %v1892
      %vm1901 = vcmp.lt.f32.partialorder %v1824, %v1893
      %v1902 = vsel %vm1894, 1, 0
      %v1903 = vsel %vm1895, 1, 0
      %v1904 = vsel %vm1896, 1, 0
      %v1905 = vsel %vm1897, 1, 0
      %v1906 = vsel %vm1898, 1, 0
      %v1907 = vsel %vm1899, 1, 0
      %v1908 = vsel %vm1900, 1, 0
      %v1909 = vsel %vm1901, 1, 0
      %v1910 = vcvt.s32.f32 %v1902
      %v1911 = vcvt.s32.f32 %v1903
      %v1912 = vcvt.s32.f32 %v1904
      %v1913 = vcvt.s32.f32 %v1905
      %v1914 = vcvt.s32.f32 %v1906
      %v1915 = vcvt.s32.f32 %v1907
      %v1916 = vcvt.s32.f32 %v1908
      %v1917 = vcvt.s32.f32 %v1909
      %v1918 = vmul.f32 %v1520, %v1910
      %v1919 = vmul.f32 %v1521, %v1911
      %v1920 = vmul.f32 %v1522, %v1912
      %v1921 = vmul.f32 %v1523, %v1913
      %v1922 = vmul.f32 %v1524, %v1914
      %v1923 = vmul.f32 %v1525, %v1915
      %v1924 = vmul.f32 %v1526, %v1916
      %v1925 = vmul.f32 %v1527, %v1917
      %1927 = vset.pattern.permute.xlu0 0
      %1928 = vperm.xlu0 %1927, %v1918
      %v1929 = vpop.permute.xlu0 %1928
      %1932 = vset.pattern.permute.xlu0 0
      %1933 = vperm.xlu0 %1932, %v1919
      %v1934 = vpop.permute.xlu0 %1933
      %1937 = vset.pattern.permute.xlu0 0
      %1938 = vperm.xlu0 %1937, %v1920
      %v1939 = vpop.permute.xlu0 %1938
      %1942 = vset.pattern.permute.xlu0 0
      %1943 = vperm.xlu0 %1942, %v1921
      %v1944 = vpop.permute.xlu0 %1943
      %1947 = vset.pattern.permute.xlu0 0
      %1948 = vperm.xlu0 %1947, %v1922
      %v1949 = vpop.permute.xlu0 %1948
      %1952 = vset.pattern.permute.xlu0 0
      %1953 = vperm.xlu0 %1952, %v1923
      %v1954 = vpop.permute.xlu0 %1953
      %1957 = vset.pattern.permute.xlu0 0
      %1958 = vperm.xlu0 %1957, %v1924
      %v1959 = vpop.permute.xlu0 %1958
      %1962 = vset.pattern.permute.xlu0 0
      %1963 = vperm.xlu0 %1962, %v1925
      %v1964 = vpop.permute.xlu0 %1963
      %v1966 = vmul.f32 %v1306, %v1929
      %v1967 = vmul.f32 %v1307, %v1934
      %v1968 = vmul.f32 %v1308, %v1939
      %v1969 = vmul.f32 %v1309, %v1944
      %v1970 = vmul.f32 %v1310, %v1949
      %v1971 = vmul.f32 %v1311, %v1954
      %v1972 = vmul.f32 %v1312, %v1959
      %v1973 = vmul.f32 %v1313, %v1964
      %v1974 = vld [vmem:[%s621] sm:$0x3]
      %v1975 = vpack.c.bf16 %v1911, %v1910
      %v1976 = vpack.c.bf16 %v1913, %v1912
      %v1977 = vpack.c.bf16 %v1915, %v1914
      %v1978 = vpack.c.bf16 %v1917, %v1916
      %v1980 = vsel %vm785, %v1974, 0
      %1982 = vmatprep.subr.bf16.mxu0 0
      %1983 = vmatpush1.bf16.msra.mxu0 0
      %1984 = vmatprep.subr.bf16.mxu0 0
      %1985 = vmatpush1.bf16.msra.mxu0 0
      %1986 = vmatprep.subr.bf16.mxu0 0
      %1987 = vmatpush1.bf16.msra.mxu0 0
      %1988 = vmatprep.subr.bf16.mxu0 0
      %1989 = vmatpush1.bf16.msra.mxu0 0
      %1990 = vmatprep.subr.bf16.mxu0 0
      %1991 = vmatpush1.bf16.msra.mxu0 %v1978
      %1992 = vmatprep.subr.bf16.mxu0 0
      %1993 = vmatpush1.bf16.msra.mxu0 %v1977
      %1994 = vmatprep.subr.bf16.mxu0 0
      %1995 = vmatpush1.bf16.msra.mxu0 %v1976
      %1996 = vmatprep.subr.bf16.mxu0 0
      %1997 = vmatpush1.bf16.msra.mxu0 %v1975
      %1998 = vmatprep.subr.bf16.mxu0 0
      %1999 = vmatpush2.bf16.msra.mxu0 0
      %2000 = vmatprep.subr.bf16.mxu0 0
      %2001 = vmatpush2.bf16.msra.mxu0 0
      %2002 = vmatprep.subr.bf16.mxu0 0
      %2003 = vmatpush2.bf16.msra.mxu0 0
      %2004 = vmatprep.subr.bf16.mxu0 0
      %2005 = vmatpush2.bf16.msra.mxu0 0
      %2006 = vmatprep.subr.bf16.mxu0 0
      %2007 = vmatpush2.bf16.msra.mxu0 0
      %2008 = vmatprep.subr.bf16.mxu0 0
      %2009 = vmatpush2.bf16.msra.mxu0 0
      %2010 = vmatprep.subr.bf16.mxu0 0
      %2011 = vmatpush2.bf16.msra.mxu0 0
      %2012 = vmatprep.subr.bf16.mxu0 0
      %2013 = vmatpush2.bf16.msra.mxu0 0
      %2014 = vmatprep.mubr.bf16.mxu0 0
      %2015 = vmatmul.mubr.bf16.gmra.mxu0 %v1980
      %v2016 = vpop.f32.mrf.mxu0
      %v2017 = vadd.f32 0.0, %v2016
      %v2018 = vpop.f32.mrf.mxu0
      %v2019 = vpop.f32.mrf.mxu0
      %v2020 = vpop.f32.mrf.mxu0
      %2021 = vdwg.mxu0
      %v2022 = vpack.c.bf16 %v1967, %v1966
      %v2023 = vpack.c.bf16 %v1969, %v1968
      %v2024 = vpack.c.bf16 %v1971, %v1970
      %v2025 = vpack.c.bf16 %v1973, %v1972
      %2026 = vmatprep.subr.bf16.mxu0 0
      %2027 = vmatpush1.bf16.msra.mxu0 0
      %2028 = vmatprep.subr.bf16.mxu0 0
      %2029 = vmatpush1.bf16.msra.mxu0 0
      %2030 = vmatprep.subr.bf16.mxu0 0
      %2031 = vmatpush1.bf16.msra.mxu0 0
      %2032 = vmatprep.subr.bf16.mxu0 0
      %2033 = vmatpush1.bf16.msra.mxu0 0
      %2034 = vmatprep.subr.bf16.mxu0 0
      %2035 = vmatpush1.bf16.msra.mxu0 %v2025
      %2036 = vmatprep.subr.bf16.mxu0 0
      %2037 = vmatpush1.bf16.msra.mxu0 %v2024
      %2038 = vmatprep.subr.bf16.mxu0 0
      %2039 = vmatpush1.bf16.msra.mxu0 %v2023
      %2040 = vmatprep.subr.bf16.mxu0 0
      %2041 = vmatpush1.bf16.msra.mxu0 %v2022
      %2042 = vmatprep.subr.bf16.mxu0 0
      %2043 = vmatpush2.bf16.msra.mxu0 0
      %2044 = vmatprep.subr.bf16.mxu0 0
      %2045 = vmatpush2.bf16.msra.mxu0 0
      %2046 = vmatprep.subr.bf16.mxu0 0
      %2047 = vmatpush2.bf16.msra.mxu0 0
      %2048 = vmatprep.subr.bf16.mxu0 0
      %2049 = vmatpush2.bf16.msra.mxu0 0
      %2050 = vmatprep.subr.bf16.mxu0 0
      %2051 = vmatpush2.bf16.msra.mxu0 0
      %2052 = vmatprep.subr.bf16.mxu0 0
      %2053 = vmatpush2.bf16.msra.mxu0 0
      %2054 = vmatprep.subr.bf16.mxu0 0
      %2055 = vmatpush2.bf16.msra.mxu0 0
      %2056 = vmatprep.subr.bf16.mxu0 0
      %2057 = vmatpush2.bf16.msra.mxu0 0
      %2058 = vmatprep.mubr.bf16.mxu0 0
      %2059 = vmatmul.mubr.bf16.gmra.mxu0 %v1980
      %v2060 = vpop.f32.mrf.mxu0
      %v2061 = vadd.f32 0.0, %v2060
      %v2062 = vpop.f32.mrf.mxu0
      %v2063 = vpop.f32.mrf.mxu0
      %v2064 = vpop.f32.mrf.mxu0
      %2065 = vdwg.mxu0
      %v2066 = vmax.f32 %v2017, 1.0
      %2068 = vset.pattern.permute.xlu0 0
      %2069 = vperm.xlu0 %2068, %v2066
      %v2070 = vpop.permute.xlu0 %2069
      %v2072 = vrcp.pop %v2070
      %v2073 = vmul.f32 %v2061, %v2072
      %v2074 = vsub.f32 %v1910, 1.0
      %v2075 = vsub.f32 %v1911, 1.0
      %v2076 = vsub.f32 %v1912, 1.0
      %v2077 = vsub.f32 %v1913, 1.0
      %v2078 = vsub.f32 %v1914, 1.0
      %v2079 = vsub.f32 %v1915, 1.0
      %v2080 = vsub.f32 %v1916, 1.0
      %v2081 = vsub.f32 %v1917, 1.0
      %v2082 = vmul.f32 %v2074, 1e+30
      %v2083 = vmul.f32 %v2075, 1e+30
      %v2084 = vmul.f32 %v2076, 1e+30
      %v2085 = vmul.f32 %v2077, 1e+30
      %v2086 = vmul.f32 %v2078, 1e+30
      %v2087 = vmul.f32 %v2079, 1e+30
      %v2088 = vmul.f32 %v2080, 1e+30
      %v2089 = vmul.f32 %v2081, 1e+30
      %v2090 = vadd.f32 %v1966, %v2082
      %v2091 = vadd.f32 %v1967, %v2083
      %v2092 = vadd.f32 %v1968, %v2084
      %v2093 = vadd.f32 %v1969, %v2085
      %v2094 = vadd.f32 %v1970, %v2086
      %v2095 = vadd.f32 %v1971, %v2087
      %v2096 = vadd.f32 %v1972, %v2088
      %v2097 = vadd.f32 %v1973, %v2089
      %v2098 = vsel %vm1366, %v2090, -inf
      %v2099 = vsel %vm1366, %v2091, -inf
      %v2100 = vmax.f32 %v2098, %v2099
      %v2101 = vrot.slane %v2100, 4
      %v2102 = vmax.f32 %v2100, %v2101
      %v2103 = vrot.slane %v2102, 2
      %v2104 = vmax.f32 %v2102, %v2103
      %v2105 = vrot.slane %v2104, 1
      %v2106 = vmax.f32 %v2104, %v2105
      %v2107 = vsel %vm1366, %v2092, -inf
      %v2108 = vsel %vm1366, %v2093, -inf
      %v2109 = vmax.f32 %v2107, %v2108
      %v2110 = vrot.slane %v2109, 4
      %v2111 = vmax.f32 %v2109, %v2110
      %v2112 = vrot.slane %v2111, 2
      %v2113 = vmax.f32 %v2111, %v2112
      %v2114 = vrot.slane %v2113, 1
      %v2115 = vmax.f32 %v2113, %v2114
      %v2116 = vsel %vm1366, %v2094, -inf
      %v2117 = vsel %vm1366, %v2095, -inf
      %v2118 = vmax.f32 %v2116, %v2117
      %v2119 = vrot.slane %v2118, 4
      %v2120 = vmax.f32 %v2118, %v2119
      %v2121 = vrot.slane %v2120, 2
      %v2122 = vmax.f32 %v2120, %v2121
      %v2123 = vrot.slane %v2122, 1
      %v2124 = vmax.f32 %v2122, %v2123
      %v2125 = vsel %vm1366, %v2096, -inf
      %v2126 = vsel %vm1366, %v2097, -inf
      %v2127 = vmax.f32 %v2125, %v2126
      %v2128 = vrot.slane %v2127, 4
      %v2129 = vmax.f32 %v2127, %v2128
      %v2130 = vrot.slane %v2129, 2
      %v2131 = vmax.f32 %v2129, %v2130
      %v2132 = vrot.slane %v2131, 1
      %v2133 = vmax.f32 %v2131, %v2132
      %vm2134 = vcmp.gt.f32.partialorder %v2017, 0.0
      %v2135 = vsel %vm2134, 1, 0
      %2136 = vset.pattern.permute.xlu0 0
      %2137 = vperm.xlu0 %2136, %v2135
      %v2138 = vpop.permute.xlu0 %2137
      %vm2139 = vcmp.eq.s32.totalorder %v2138, 1
      %vm2144 = vcmask 1041409
      %v2145 = vsel %vm2144, %v2115, %v2106
      %vm2146 = vcmask 1042434
      %v2147 = vsel %vm2146, %v2124, %v2145
      %vm2148 = vcmask 1043459
      %v2149 = vsel %vm2148, %v2133, %v2147
      %v2151 = vsel %vm2139, %v2149, 0.0
      %2153 = vrot.lane.b32.xlu0 %v2151, 96
      %v2154 = vpop.permute.xlu0 %2153
      %v2156 = vsel %vm1366, %v2073, %v2154
      %v2157 = vld [vmem:[%s12] sm:$0xff]
      %v2158 = vld [vmem:[%s12 + $0x8] sm:$0xff]
      %v2159 = vld [vmem:[%s12 + $0x10] sm:$0xff]
      %v2160 = vld [vmem:[%s12 + $0x18] sm:$0xff]
      %v2161 = vld [vmem:[%s12 + $0x20] sm:$0xff]
      %v2162 = vld [vmem:[%s12 + $0x28] sm:$0xff]
      %v2163 = vld [vmem:[%s12 + $0x30] sm:$0xff]
      %v2164 = vld [vmem:[%s12 + $0x38] sm:$0xff]
      %v2165 = vld [vmem:[%s12 + $0x40] sm:$0xff]
      %v2166 = vld [vmem:[%s12 + $0x48] sm:$0xff]
      %v2167 = vld [vmem:[%s12 + $0x50] sm:$0xff]
      %v2168 = vld [vmem:[%s12 + $0x58] sm:$0xff]
      %v2169 = vld [vmem:[%s12 + $0x60] sm:$0xff]
      %v2170 = vld [vmem:[%s12 + $0x68] sm:$0xff]
      %v2171 = vld [vmem:[%s12 + $0x70] sm:$0xff]
      %v2172 = vld [vmem:[%s12 + $0x78] sm:$0xff]
      %v2173 = vld [vmem:[%s12 + $0x80] sm:$0xff]
      %v2174 = vld [vmem:[%s12 + $0x88] sm:$0xff]
      %v2175 = vld [vmem:[%s12 + $0x90] sm:$0xff]
      %v2176 = vld [vmem:[%s12 + $0x98] sm:$0xff]
      %v2177 = vld [vmem:[%s12 + $0xa0] sm:$0xff]
      %v2178 = vld [vmem:[%s12 + $0xa8] sm:$0xff]
      %v2179 = vld [vmem:[%s12 + $0xb0] sm:$0xff]
      %v2180 = vld [vmem:[%s12 + $0xb8] sm:$0xff]
      %v2181 = vld [vmem:[%s13] sm:$0x1]
      %v2183 = vlaneseq
      %v2184 = vshrl.u32 %v2183, 7
      %v2185 = vsub.s32 0, %v2184
      %v2186 = vrot.slane %v2181, %v2185
      %v2188 = vsel %vm785, %v2154, 0
      %2190 = vmatprep.subr.mxu0 0.0
      %2191 = vmatpush1.msra.mxu0 %v2172
      %2192 = vmatprep.subr.mxu0 0.0
      %2193 = vmatpush1.msra.mxu0 %v2171
      %2194 = vmatprep.subr.mxu0 0.0
      %2195 = vmatpush1.msra.mxu0 %v2170
      %2196 = vmatprep.subr.mxu0 0.0
      %2197 = vmatpush1.msra.mxu0 %v2169
      %2198 = vmatprep.subr.mxu0 0.0
      %2199 = vmatpush1.msra.mxu0 %v2168
      %2200 = vmatprep.subr.mxu0 0.0
      %2201 = vmatpush1.msra.mxu0 %v2167
      %2202 = vmatprep.subr.mxu0 0.0
      %2203 = vmatpush1.msra.mxu0 %v2166
      %2204 = vmatprep.subr.mxu0 0.0
      %2205 = vmatpush1.msra.mxu0 %v2165
      %2206 = vmatprep.subr.mxu0 0.0
      %2207 = vmatpush1.msra.mxu0 %v2164
      %2208 = vmatprep.subr.mxu0 0.0
      %2209 = vmatpush1.msra.mxu0 %v2163
      %2210 = vmatprep.subr.mxu0 0.0
      %2211 = vmatpush1.msra.mxu0 %v2162
      %2212 = vmatprep.subr.mxu0 0.0
      %2213 = vmatpush1.msra.mxu0 %v2161
      %2214 = vmatprep.subr.mxu0 0.0
      %2215 = vmatpush1.msra.mxu0 %v2160
      %2216 = vmatprep.subr.mxu0 0.0
      %2217 = vmatpush1.msra.mxu0 %v2159
      %2218 = vmatprep.subr.mxu0 0.0
      %2219 = vmatpush1.msra.mxu0 %v2158
      %2220 = vmatprep.subr.mxu0 0.0
      %2221 = vmatpush1.msra.mxu0 %v2157
      %2222 = vmatprep.subr.mxu0 0.0
      %2223 = vmatpush2.msra.mxu0 0.0
      %2224 = vmatprep.subr.mxu0 0.0
      %2225 = vmatpush2.msra.mxu0 0.0
      %2226 = vmatprep.subr.mxu0 0.0
      %2227 = vmatpush2.msra.mxu0 0.0
      %2228 = vmatprep.subr.mxu0 0.0
      %2229 = vmatpush2.msra.mxu0 0.0
      %2230 = vmatprep.subr.mxu0 0.0
      %2231 = vmatpush2.msra.mxu0 0.0
      %2232 = vmatprep.subr.mxu0 0.0
      %2233 = vmatpush2.msra.mxu0 0.0
      %2234 = vmatprep.subr.mxu0 0.0
      %2235 = vmatpush2.msra.mxu0 0.0
      %2236 = vmatprep.subr.mxu0 0.0
      %2237 = vmatpush2.msra.mxu0 0.0
      %2238 = vmatprep.subr.mxu0 0.0
      %2239 = vmatpush2.msra.mxu0 %v2180
      %2240 = vmatprep.subr.mxu0 0.0
      %2241 = vmatpush2.msra.mxu0 %v2179
      %2242 = vmatprep.subr.mxu0 0.0
      %2243 = vmatpush2.msra.mxu0 %v2178
      %2244 = vmatprep.subr.mxu0 0.0
      %2245 = vmatpush2.msra.mxu0 %v2177
      %2246 = vmatprep.subr.mxu0 0.0
      %2247 = vmatpush2.msra.mxu0 %v2176
      %2248 = vmatprep.subr.mxu0 0.0
      %2249 = vmatpush2.msra.mxu0 %v2175
      %2250 = vmatprep.subr.mxu0 0.0
      %2251 = vmatpush2.msra.mxu0 %v2174
      %2252 = vmatprep.subr.mxu0 0.0
      %2253 = vmatpush2.msra.mxu0 %v2173
      %2254 = vmatprep.mubr.f32.mxu0 %v2188
      %2255 = vmatmul.mubr.f32.gmra.mxu0 %v2156
      %v2256 = vpop.f32.mrf.mxu0
      %v2257 = vadd.f32 %v2186, %v2256
      %v2258 = vpop.f32.mrf.mxu0
      %2259 = vdwg.mxu0
      %v2260 = vmax.f32 %v2257, 0.0
      %v2261 = vld [vmem:[%s14] sm:$0xff]
      %v2262 = vld [vmem:[%s14 + $0x8] sm:$0xff]
      %v2263 = vld [vmem:[%s14 + $0x10] sm:$0xff]
      %v2264 = vld [vmem:[%s14 + $0x18] sm:$0xff]
      %v2265 = vld [vmem:[%s15] sm:$0x1]
      %v2267 = vlaneseq
      %v2268 = vshrl.u32 %v2267, 7
      %v2269 = vsub.s32 0, %v2268
      %v2270 = vrot.slane %v2265, %v2269
      %v2273 = vsel %vm891, %v2260, 0
      %2275 = vmatprep.subr.mxu0 0.0
      %2276 = vmatpush1.msra.mxu0 0.0
      %2277 = vmatprep.subr.mxu0 0.0
      %2278 = vmatpush1.msra.mxu0 0.0
      %2279 = vmatprep.subr.mxu0 0.0
      %2280 = vmatpush1.msra.mxu0 0.0
      %2281 = vmatprep.subr.mxu0 0.0
      %2282 = vmatpush1.msra.mxu0 0.0
      %2283 = vmatprep.subr.mxu0 0.0
      %2284 = vmatpush1.msra.mxu0 0.0
      %2285 = vmatprep.subr.mxu0 0.0
      %2286 = vmatpush1.msra.mxu0 0.0
      %2287 = vmatprep.subr.mxu0 0.0
      %2288 = vmatpush1.msra.mxu0 0.0
      %2289 = vmatprep.subr.mxu0 0.0
      %2290 = vmatpush1.msra.mxu0 0.0
      %2291 = vmatprep.subr.mxu0 0.0
      %2292 = vmatpush1.msra.mxu0 0.0
      %2293 = vmatprep.subr.mxu0 0.0
      %2294 = vmatpush1.msra.mxu0 0.0
      %2295 = vmatprep.subr.mxu0 0.0
      %2296 = vmatpush1.msra.mxu0 0.0
      %2297 = vmatprep.subr.mxu0 0.0
      %2298 = vmatpush1.msra.mxu0 0.0
      %2299 = vmatprep.subr.mxu0 0.0
      %2300 = vmatpush1.msra.mxu0 %v2264
      %2301 = vmatprep.subr.mxu0 0.0
      %2302 = vmatpush1.msra.mxu0 %v2263
      %2303 = vmatprep.subr.mxu0 0.0
      %2304 = vmatpush1.msra.mxu0 %v2262
      %2305 = vmatprep.subr.mxu0 0.0
      %2306 = vmatpush1.msra.mxu0 %v2261
      %2307 = vmatprep.subr.mxu0 0.0
      %2308 = vmatpush2.msra.mxu0 0.0
      %2309 = vmatprep.subr.mxu0 0.0
      %2310 = vmatpush2.msra.mxu0 0.0
      %2311 = vmatprep.subr.mxu0 0.0
      %2312 = vmatpush2.msra.mxu0 0.0
      %2313 = vmatprep.subr.mxu0 0.0
      %2314 = vmatpush2.msra.mxu0 0.0
      %2315 = vmatprep.subr.mxu0 0.0
      %2316 = vmatpush2.msra.mxu0 0.0
      %2317 = vmatprep.subr.mxu0 0.0
      %2318 = vmatpush2.msra.mxu0 0.0
      %2319 = vmatprep.subr.mxu0 0.0
      %2320 = vmatpush2.msra.mxu0 0.0
      %2321 = vmatprep.subr.mxu0 0.0
      %2322 = vmatpush2.msra.mxu0 0.0
      %2323 = vmatprep.subr.mxu0 0.0
      %2324 = vmatpush2.msra.mxu0 0.0
      %2325 = vmatprep.subr.mxu0 0.0
      %2326 = vmatpush2.msra.mxu0 0.0
      %2327 = vmatprep.subr.mxu0 0.0
      %2328 = vmatpush2.msra.mxu0 0.0
      %2329 = vmatprep.subr.mxu0 0.0
      %2330 = vmatpush2.msra.mxu0 0.0
      %2331 = vmatprep.subr.mxu0 0.0
      %2332 = vmatpush2.msra.mxu0 0.0
      %2333 = vmatprep.subr.mxu0 0.0
      %2334 = vmatpush2.msra.mxu0 0.0
      %2335 = vmatprep.subr.mxu0 0.0
      %2336 = vmatpush2.msra.mxu0 0.0
      %2337 = vmatprep.subr.mxu0 0.0
      %2338 = vmatpush2.msra.mxu0 0.0
      %2339 = vmatprep.mubr.f32.mxu0 0.0
      %2340 = vmatmul.mubr.f32.gmra.mxu0 %v2273
      %v2341 = vpop.f32.mrf.mxu0
      %v2342 = vadd.f32 %v2270, %v2341
      %v2343 = vpop.f32.mrf.mxu0
      %2344 = vdwg.mxu0
      %v2345 = vmax.f32 %v2342, 0.0
      %v2346 = vld [vmem:[%s16] sm:$0xff]
      %v2347 = vld [vmem:[%s16 + $0x8] sm:$0xff]
      %v2348 = vld [vmem:[%s17] sm:$0x1]
      %v2350 = vlaneseq
      %v2351 = vshrl.u32 %v2350, 7
      %v2352 = vsub.s32 0, %v2351
      %v2353 = vrot.slane %v2348, %v2352
      %v2356 = vsel %vm676, %v2345, 0
      %2358 = vmatprep.subr.mxu0 0.0
      %2359 = vmatpush1.msra.mxu0 0.0
      %2360 = vmatprep.subr.mxu0 0.0
      %2361 = vmatpush1.msra.mxu0 0.0
      %2362 = vmatprep.subr.mxu0 0.0
      %2363 = vmatpush1.msra.mxu0 0.0
      %2364 = vmatprep.subr.mxu0 0.0
      %2365 = vmatpush1.msra.mxu0 0.0
      %2366 = vmatprep.subr.mxu0 0.0
      %2367 = vmatpush1.msra.mxu0 0.0
      %2368 = vmatprep.subr.mxu0 0.0
      %2369 = vmatpush1.msra.mxu0 0.0
      %2370 = vmatprep.subr.mxu0 0.0
      %2371 = vmatpush1.msra.mxu0 0.0
      %2372 = vmatprep.subr.mxu0 0.0
      %2373 = vmatpush1.msra.mxu0 0.0
      %2374 = vmatprep.subr.mxu0 0.0
      %2375 = vmatpush1.msra.mxu0 0.0
      %2376 = vmatprep.subr.mxu0 0.0
      %2377 = vmatpush1.msra.mxu0 0.0
      %2378 = vmatprep.subr.mxu0 0.0
      %2379 = vmatpush1.msra.mxu0 0.0
      %2380 = vmatprep.subr.mxu0 0.0
      %2381 = vmatpush1.msra.mxu0 0.0
      %2382 = vmatprep.subr.mxu0 0.0
      %2383 = vmatpush1.msra.mxu0 0.0
      %2384 = vmatprep.subr.mxu0 0.0
      %2385 = vmatpush1.msra.mxu0 0.0
      %2386 = vmatprep.subr.mxu0 0.0
      %2387 = vmatpush1.msra.mxu0 %v2347
      %2388 = vmatprep.subr.mxu0 0.0
      %2389 = vmatpush1.msra.mxu0 %v2346
      %2390 = vmatprep.subr.mxu0 0.0
      %2391 = vmatpush2.msra.mxu0 0.0
      %2392 = vmatprep.subr.mxu0 0.0
      %2393 = vmatpush2.msra.mxu0 0.0
      %2394 = vmatprep.subr.mxu0 0.0
      %2395 = vmatpush2.msra.mxu0 0.0
      %2396 = vmatprep.subr.mxu0 0.0
      %2397 = vmatpush2.msra.mxu0 0.0
      %2398 = vmatprep.subr.mxu0 0.0
      %2399 = vmatpush2.msra.mxu0 0.0
      %2400 = vmatprep.subr.mxu0 0.0
      %2401 = vmatpush2.msra.mxu0 0.0
      %2402 = vmatprep.subr.mxu0 0.0
      %2403 = vmatpush2.msra.mxu0 0.0
      %2404 = vmatprep.subr.mxu0 0.0
      %2405 = vmatpush2.msra.mxu0 0.0
      %2406 = vmatprep.subr.mxu0 0.0
      %2407 = vmatpush2.msra.mxu0 0.0
      %2408 = vmatprep.subr.mxu0 0.0
      %2409 = vmatpush2.msra.mxu0 0.0
      %2410 = vmatprep.subr.mxu0 0.0
      %2411 = vmatpush2.msra.mxu0 0.0
      %2412 = vmatprep.subr.mxu0 0.0
      %2413 = vmatpush2.msra.mxu0 0.0
      %2414 = vmatprep.subr.mxu0 0.0
      %2415 = vmatpush2.msra.mxu0 0.0
      %2416 = vmatprep.subr.mxu0 0.0
      %2417 = vmatpush2.msra.mxu0 0.0
      %2418 = vmatprep.subr.mxu0 0.0
      %2419 = vmatpush2.msra.mxu0 0.0
      %2420 = vmatprep.subr.mxu0 0.0
      %2421 = vmatpush2.msra.mxu0 0.0
      %2422 = vmatprep.mubr.f32.mxu0 0.0
      %2423 = vmatmul.mubr.f32.gmra.mxu0 %v2356
      %v2424 = vpop.f32.mrf.mxu0
      %v2425 = vadd.f32 %v2353, %v2424
      %v2426 = vpop.f32.mrf.mxu0
      %2427 = vdwg.mxu0
      %2428 = vst [vmem:[%s630] sm:$0xf] %v2425
      %p2429 = scmp.lt.s32.totalorder %s29, 1
      %s2430 = scalar_select %p2429, %s29, 1
      %s2431 = smul.addr %s2430, 4
      %s2432 = scalar_lea.vmem %s18, %s2431
      // Predicated region
      $region93: #{model_a_forward_batched.1} parent=91 // pred_check
        %p2433 = pneg %p445
      $region94: #{model_a_forward_batched.1} parent=91 // pred_check_branch
        %2435 = sbr.rel (%p2433) target = $region96
      $region95: #{model_a_forward_batched.1} parent=91 // pred_region
        _
      $region96: #{model_a_forward_batched.1} parent=91 // pred_fallthru
        _
    $region92: #{model_a_forward_batched.1} parent=5 // pred_fallthru
      _
    %p2436 = scmp.le.s32.totalorder 2, %s24
    // Predicated region
    $region97: #{model_a_forward_batched.1} parent=5 // pred_check
      %p2437 = pneg %p2436
    $region98: #{model_a_forward_batched.1} parent=5 // pred_check_branch
      %2439 = sbr.rel (%p2437) target = $region100
    $region99: #{model_a_forward_batched.1} parent=5 // pred_region
      %s2440 = ssub.s32 %s24, 2
      // Predicated region
      $region101: #{model_a_forward_batched.1} parent=99 // pred_check
        %p2441 = pneg %p451
      $region102: #{model_a_forward_batched.1} parent=99 // pred_check_branch
        %2443 = sbr.rel (%p2441) target = $region104
      $region103: #{model_a_forward_batched.1} parent=99 // pred_region
        %p2444 = scmp.lt.s32.totalorder %s30, 1
        %s2445 = scalar_select %p2444, %s30, 1
        %s2446 = smul.addr %s2445, 4
        %s2447 = scalar_lea.vmem %s18, %s2446
      $region104: #{model_a_forward_batched.1} parent=99 // pred_fallthru
        _
    $region100: #{model_a_forward_batched.1} parent=5 // pred_fallthru
      _
  $region6: #{model_a_forward_batched.1} parent=0 // loop_footer
    %s28 = sadd.s32 1, %s24
  $region7: #{model_a_forward_batched.1} parent=0 // loop_footer_branch
    %23 = sbr.rel target = $region3
  $region8: #{model_a_forward_batched.1} parent=0 // loop_exit
    _

</llo_original>
